<compile_context>
chip_gen: v5e
topology: v5e:2x2
jax: 0.10.0
libtpu: 0.0.40
codegen_flags: <defaults>
</compile_context>

<pallas_src>
import functools

import jax
import jax.numpy as jnp
from jax.experimental import pallas as pl
from jax.experimental.pallas import tpu as pltpu

E_PAD = 128  # padded embedding width (lane-dense)


# ----------------------------------------------------------------------------
# Fused kernel: 3 x (im2col conv + pool + bias + ReLU)  ->  concat  ->  Linear
# ----------------------------------------------------------------------------
def _textcnn_fused_kernel(*refs, filter_sizes):
    """refs = (x, w0, b0, w1, b1, ..., lin_w, lin_b, out).

    x      : (1, S, Ep)  bf16   one batch row of embedded tokens
    w_j    : (fs_j*Ep, F) bf16  conv weight in im2col layout
    b_j    : (1, F)       f32   conv bias
    lin_w  : (n*F, C)     bf16
    lin_b  : (1, C)       f32
    out    : (1, 1, C)    f32
    """
    n = len(filter_sizes)
    x_ref = refs[0]
    conv_refs = refs[1:1 + 2 * n]
    lw_ref = refs[1 + 2 * n]
    lb_ref = refs[2 + 2 * n]
    o_ref = refs[3 + 2 * n]

    x = x_ref[0]                       # (S, Ep) bf16
    S = x.shape[0]

    pooled = []
    for j, fs in enumerate(filter_sizes):
        w_ref = conv_refs[2 * j]       # (fs*Ep, F) bf16
        b_ref = conv_refs[2 * j + 1]   # (1, F)     f32
        L = S - fs + 1                 # valid conv positions (stride=1, pad=0)
        # im2col: (L, fs*Ep) -> one MXU matmul with a full K dimension.
        win = jnp.concatenate([x[i:i + L, :] for i in range(fs)], axis=-1)
        conv = jnp.dot(win, w_ref[...],
                       preferred_element_type=jnp.float32)          # (L, F) f32
        # Pool over time first, then bias + ReLU (monotone -> identical result).
        pool = jnp.max(conv, axis=0, keepdims=True)                  # (1, F)
        pooled.append(jnp.maximum(pool + b_ref[...], 0.0))

    feat = jnp.concatenate(pooled, axis=-1)                          # (1, n*F) f32
    # Dropout(p=0.5) is identity in eval mode -> straight into the classifier.
    logits = jnp.dot(feat.astype(jnp.bfloat16), lw_ref[...],
                     preferred_element_type=jnp.float32) + lb_ref[...]  # (1, C)
    o_ref[0] = logits


def cnn_forward(token_ids, kparams, filter_sizes):
    """Embedding gather (XLA) + fused Pallas kernel -> logits (B, C)."""
    # Embedding lookup is a data-dependent gather; done by XLA outside the kernel.
    emb = jnp.take(kparams["emb_table"], token_ids, axis=0)   # (B, S, Ep) bf16
    B, S, Ep = emb.shape
    C = kparams["lin_b"].shape[-1]

    inputs = [emb]
    in_specs = [pl.BlockSpec((1, S, Ep), lambda b: (b, 0, 0))]
    for w, bias in zip(kparams["conv_w"], kparams["conv_b"]):
        inputs += [w, bias]
        in_specs += [pl.BlockSpec(w.shape, lambda b: (0, 0)),
                     pl.BlockSpec(bias.shape, lambda b: (0, 0))]
    inputs += [kparams["lin_w"], kparams["lin_b"]]
    in_specs += [pl.BlockSpec(kparams["lin_w"].shape, lambda b: (0, 0)),
                 pl.BlockSpec(kparams["lin_b"].shape, lambda b: (0, 0))]

    out = pl.pallas_call(
        functools.partial(_textcnn_fused_kernel,
                          filter_sizes=tuple(filter_sizes)),
        out_shape=jax.ShapeDtypeStruct((B, 1, C), jnp.float32),
        grid=(B,),
        in_specs=in_specs,
        out_specs=pl.BlockSpec((1, 1, C), lambda b: (b, 0, 0)),
        compiler_params=pltpu.CompilerParams(
            dimension_semantics=("parallel",)),
    )(*inputs)
    # TODO(synk): training-mode dropout (random mask + 1/(1-p) scale) not applied.
    return out.reshape(B, C)


# ----------------------------------------------------------------------------
# Parameters
# ----------------------------------------------------------------------------
def init_params(key, vocab_size, embedding_size, filter_sizes, num_filters,
                num_classes):
    """f32 reference parameters (PyTorch-equivalent layout)."""
    keys = jax.random.split(key, 3 + 2 * len(filter_sizes))
    params = {
        "emb_table": 0.1 * jax.random.normal(
            keys[0], (vocab_size, embedding_size), jnp.float32),
        # conv_w[j] has shape (fs, E, F) == PyTorch Conv2d weight (F,1,fs,E) transposed
        "conv_w": [],
        "conv_b": [],
        "lin_w": 0.05 * jax.random.normal(
            keys[1], (len(filter_sizes) * num_filters, num_classes), jnp.float32),
        "lin_b": 0.05 * jax.random.normal(
            keys[2], (1, num_classes), jnp.float32),
    }
    for j, fs in enumerate(filter_sizes):
        params["conv_w"].append(0.05 * jax.random.normal(
            keys[3 + 2 * j], (fs, embedding_size, num_filters), jnp.float32))
        params["conv_b"].append(0.05 * jax.random.normal(
            keys[4 + 2 * j], (1, num_filters), jnp.float32))
    return params


def prepare_kernel_params(params, filter_sizes, e_pad=E_PAD):
    """Pad E -> e_pad (lane-dense), reshape conv weights to im2col (fs*Ep, F)
    layout and cast MXU operands to bf16 (biases stay f32)."""
    E = params["emb_table"].shape[1]
    pad = e_pad - E
    kp = {
        "emb_table": jnp.pad(params["emb_table"],
                             ((0, 0), (0, pad))).astype(jnp.bfloat16),
        "conv_w": [],
        "conv_b": [b.astype(jnp.float32) for b in params["conv_b"]],
        "lin_w": params["lin_w"].astype(jnp.bfloat16),
        "lin_b": params["lin_b"].astype(jnp.float32),
    }
    for w in params["conv_w"]:
        fs = w.shape[0]
        wp = jnp.pad(w, ((0, 0), (0, pad), (0, 0)))         # (fs, Ep, F)
        kp["conv_w"].append(wp.reshape(fs * e_pad, -1).astype(jnp.bfloat16))
    return kp


# ----------------------------------------------------------------------------
# Pure-JAX f32 reference (matches CNNModel.forward, eval mode)
# ----------------------------------------------------------------------------
def reference_forward(token_ids, params, filter_sizes):
    emb = params["emb_table"][token_ids]                    # (B, S, E)
    S = emb.shape[1]
    feats = []
    for j, fs in enumerate(filter_sizes):
        w, b = params["conv_w"][j], params["conv_b"][j]
        L = S - fs + 1
        acc = sum(jnp.einsum("ble,ef->blf", emb[:, i:i + L, :], w[i])
                  for i in range(fs))
        act = jnp.maximum(acc + b[None], 0.0)
        feats.append(jnp.max(act, axis=1))
    feat = jnp.concatenate(feats, axis=1)
    return feat @ params["lin_w"] + params["lin_b"]


if __name__ == "__main__":
    vocab_size = 50
    embedding_size = 100
    filter_sizes = [3, 4, 5]
    num_filters = 128
    num_classes = 2
    batch = 2
    seq_len = 8  # must be >= max(filter_sizes)

    key = jax.random.PRNGKey(0)
    k_ids, k_params = jax.random.split(key)

    params = init_params(k_params, vocab_size, embedding_size, filter_sizes,
                         num_filters, num_classes)
    token_ids = jax.random.randint(k_ids, (batch, seq_len), 0, vocab_size,
                                   dtype=jnp.int32)

    kparams = prepare_kernel_params(params, filter_sizes)
    logits = cnn_forward(token_ids, kparams, filter_sizes)
    jax.block_until_ready(logits)
    assert logits.shape == (batch, num_classes), logits.shape

    # Loose tolerance: MXU operands are bf16 (f32 accumulation).
    ref = reference_forward(token_ids, params, filter_sizes)
    assert jnp.allclose(logits, ref, atol=2e-2, rtol=2e-2), (logits, ref)
    print("KERNEL_OK")
</pallas_src>

<mosaic_0001>
module attributes {stable_mosaic.version = 11 : i64} {
  func.func @_textcnn_fused_kernel(%arg0: i32, %arg1: memref<1x8x128xbf16, #tpu.memory_space<vmem>>, %arg2: memref<384x128xbf16, #tpu.memory_space<vmem>>, %arg3: memref<1x128xf32, #tpu.memory_space<vmem>>, %arg4: memref<512x128xbf16, #tpu.memory_space<vmem>>, %arg5: memref<1x128xf32, #tpu.memory_space<vmem>>, %arg6: memref<640x128xbf16, #tpu.memory_space<vmem>>, %arg7: memref<1x128xf32, #tpu.memory_space<vmem>>, %arg8: memref<384x2xbf16, #tpu.memory_space<vmem>>, %arg9: memref<1x2xf32, #tpu.memory_space<vmem>>, %arg10: memref<1x1x2xf32, #tpu.memory_space<vmem>>) attributes {dimension_semantics = [#tpu.dimension_semantics<parallel>], iteration_bounds = array<i64: 2>, scalar_prefetch = 0 : i64, scratch_operands = 0 : i64, tpu.core_type = #tpu.core_type<tc>, window_params = [{transform_indices = @transform_0, window_bounds = array<i64: 1, 8, 128>}, {pipeline_mode = #tpu.pipeline_mode<synchronous>, transform_indices = @transform_1, window_bounds = array<i64: 384, 128>}, {pipeline_mode = #tpu.pipeline_mode<synchronous>, transform_indices = @transform_2, window_bounds = array<i64: 1, 128>}, {pipeline_mode = #tpu.pipeline_mode<synchronous>, transform_indices = @transform_3, window_bounds = array<i64: 512, 128>}, {pipeline_mode = #tpu.pipeline_mode<synchronous>, transform_indices = @transform_4, window_bounds = array<i64: 1, 128>}, {pipeline_mode = #tpu.pipeline_mode<synchronous>, transform_indices = @transform_5, window_bounds = array<i64: 640, 128>}, {pipeline_mode = #tpu.pipeline_mode<synchronous>, transform_indices = @transform_6, window_bounds = array<i64: 1, 128>}, {pipeline_mode = #tpu.pipeline_mode<synchronous>, transform_indices = @transform_7, window_bounds = array<i64: 384, 2>}, {pipeline_mode = #tpu.pipeline_mode<synchronous>, transform_indices = @transform_8, window_bounds = array<i64: 1, 2>}, {transform_indices = @transform_9, window_bounds = array<i64: 1, 1, 2>}]} {
    %c0 = arith.constant 0 : index
    %c0_0 = arith.constant 0 : index
    %c0_1 = arith.constant 0 : index
    %0 = vector.load %arg1[%c0, %c0_0, %c0_1] : memref<1x8x128xbf16, #tpu.memory_space<vmem>>, vector<1x8x128xbf16>
    %1 = vector.shape_cast %0 : vector<1x8x128xbf16> to vector<8x128xbf16>
    %2 = vector.extract_strided_slice %1 {offsets = [0, 0], sizes = [6, 128], strides = [1, 1]} : vector<8x128xbf16> to vector<6x128xbf16>
    %3 = vector.extract_strided_slice %1 {offsets = [1, 0], sizes = [6, 128], strides = [1, 1]} : vector<8x128xbf16> to vector<6x128xbf16>
    %4 = vector.extract_strided_slice %1 {offsets = [2, 0], sizes = [6, 128], strides = [1, 1]} : vector<8x128xbf16> to vector<6x128xbf16>
    %5 = tpu.concatenate %2, %3, %4 in 1 : vector<6x128xbf16>, vector<6x128xbf16>, vector<6x128xbf16> -> vector<6x384xbf16>
    %c0_2 = arith.constant 0 : index
    %c0_3 = arith.constant 0 : index
    %6 = vector.load %arg2[%c0_2, %c0_3] : memref<384x128xbf16, #tpu.memory_space<vmem>>, vector<384x128xbf16>
    %cst = arith.constant dense<0.000000e+00> : vector<6x128xf32>
    %7 = tpu.matmul %5, %6, %cst {dimension_numbers = #tpu.dot_dimension_numbers<[1], [0], [0], [1], [0, 0, 1, 1], [], []>} : vector<6x384xbf16>, vector<384x128xbf16>, vector<6x128xf32> -> vector<6x128xf32>
    %cst_4 = arith.constant dense<0xFF800000> : vector<128xf32>
    %8 = vector.multi_reduction <maximumf>, %7, %cst_4 [0] : vector<6x128xf32> to vector<128xf32>
    %9 = vector.shape_cast %8 : vector<128xf32> to vector<1x128xf32>
    %c0_5 = arith.constant 0 : index
    %c0_6 = arith.constant 0 : index
    %10 = vector.load %arg3[%c0_5, %c0_6] : memref<1x128xf32, #tpu.memory_space<vmem>>, vector<1x128xf32>
    %11 = arith.addf %9, %10 : vector<1x128xf32>
    %cst_7 = arith.constant 0.000000e+00 : f32
    %12 = vector.broadcast %cst_7 : f32 to vector<1x128xf32>
    %13 = arith.maximumf %11, %12 : vector<1x128xf32>
    %14 = vector.extract_strided_slice %1 {offsets = [0, 0], sizes = [5, 128], strides = [1, 1]} : vector<8x128xbf16> to vector<5x128xbf16>
    %15 = vector.extract_strided_slice %1 {offsets = [1, 0], sizes = [5, 128], strides = [1, 1]} : vector<8x128xbf16> to vector<5x128xbf16>
    %16 = vector.extract_strided_slice %1 {offsets = [2, 0], sizes = [5, 128], strides = [1, 1]} : vector<8x128xbf16> to vector<5x128xbf16>
    %17 = vector.extract_strided_slice %1 {offsets = [3, 0], sizes = [5, 128], strides = [1, 1]} : vector<8x128xbf16> to vector<5x128xbf16>
    %18 = tpu.concatenate %14, %15, %16, %17 in 1 : vector<5x128xbf16>, vector<5x128xbf16>, vector<5x128xbf16>, vector<5x128xbf16> -> vector<5x512xbf16>
    %c0_8 = arith.constant 0 : index
    %c0_9 = arith.constant 0 : index
    %19 = vector.load %arg4[%c0_8, %c0_9] : memref<512x128xbf16, #tpu.memory_space<vmem>>, vector<512x128xbf16>
    %cst_10 = arith.constant dense<0.000000e+00> : vector<5x128xf32>
    %20 = tpu.matmul %18, %19, %cst_10 {dimension_numbers = #tpu.dot_dimension_numbers<[1], [0], [0], [1], [0, 0, 1, 1], [], []>} : vector<5x512xbf16>, vector<512x128xbf16>, vector<5x128xf32> -> vector<5x128xf32>
    %cst_11 = arith.constant dense<0xFF800000> : vector<128xf32>
    %21 = vector.multi_reduction <maximumf>, %20, %cst_11 [0] : vector<5x128xf32> to vector<128xf32>
    %22 = vector.shape_cast %21 : vector<128xf32> to vector<1x128xf32>
    %c0_12 = arith.constant 0 : index
    %c0_13 = arith.constant 0 : index
    %23 = vector.load %arg5[%c0_12, %c0_13] : memref<1x128xf32, #tpu.memory_space<vmem>>, vector<1x128xf32>
    %24 = arith.addf %22, %23 : vector<1x128xf32>
    %cst_14 = arith.constant 0.000000e+00 : f32
    %25 = vector.broadcast %cst_14 : f32 to vector<1x128xf32>
    %26 = arith.maximumf %24, %25 : vector<1x128xf32>
    %27 = vector.extract_strided_slice %1 {offsets = [0, 0], sizes = [4, 128], strides = [1, 1]} : vector<8x128xbf16> to vector<4x128xbf16>
    %28 = vector.extract_strided_slice %1 {offsets = [1, 0], sizes = [4, 128], strides = [1, 1]} : vector<8x128xbf16> to vector<4x128xbf16>
    %29 = vector.extract_strided_slice %1 {offsets = [2, 0], sizes = [4, 128], strides = [1, 1]} : vector<8x128xbf16> to vector<4x128xbf16>
    %30 = vector.extract_strided_slice %1 {offsets = [3, 0], sizes = [4, 128], strides = [1, 1]} : vector<8x128xbf16> to vector<4x128xbf16>
    %31 = vector.extract_strided_slice %1 {offsets = [4, 0], sizes = [4, 128], strides = [1, 1]} : vector<8x128xbf16> to vector<4x128xbf16>
    %32 = tpu.concatenate %27, %28, %29, %30, %31 in 1 : vector<4x128xbf16>, vector<4x128xbf16>, vector<4x128xbf16>, vector<4x128xbf16>, vector<4x128xbf16> -> vector<4x640xbf16>
    %c0_15 = arith.constant 0 : index
    %c0_16 = arith.constant 0 : index
    %33 = vector.load %arg6[%c0_15, %c0_16] : memref<640x128xbf16, #tpu.memory_space<vmem>>, vector<640x128xbf16>
    %cst_17 = arith.constant dense<0.000000e+00> : vector<4x128xf32>
    %34 = tpu.matmul %32, %33, %cst_17 {dimension_numbers = #tpu.dot_dimension_numbers<[1], [0], [0], [1], [0, 0, 1, 1], [], []>} : vector<4x640xbf16>, vector<640x128xbf16>, vector<4x128xf32> -> vector<4x128xf32>
    %cst_18 = arith.constant dense<0xFF800000> : vector<128xf32>
    %35 = vector.multi_reduction <maximumf>, %34, %cst_18 [0] : vector<4x128xf32> to vector<128xf32>
    %36 = vector.shape_cast %35 : vector<128xf32> to vector<1x128xf32>
    %c0_19 = arith.constant 0 : index
    %c0_20 = arith.constant 0 : index
    %37 = vector.load %arg7[%c0_19, %c0_20] : memref<1x128xf32, #tpu.memory_space<vmem>>, vector<1x128xf32>
    %38 = arith.addf %36, %37 : vector<1x128xf32>
    %cst_21 = arith.constant 0.000000e+00 : f32
    %39 = vector.broadcast %cst_21 : f32 to vector<1x128xf32>
    %40 = arith.maximumf %38, %39 : vector<1x128xf32>
    %41 = tpu.concatenate %13, %26, %40 in 1 : vector<1x128xf32>, vector<1x128xf32>, vector<1x128xf32> -> vector<1x384xf32>
    %42 = arith.truncf %41 : vector<1x384xf32> to vector<1x384xbf16>
    %c0_22 = arith.constant 0 : index
    %c0_23 = arith.constant 0 : index
    %43 = vector.load %arg8[%c0_22, %c0_23] : memref<384x2xbf16, #tpu.memory_space<vmem>>, vector<384x2xbf16>
    %cst_24 = arith.constant dense<0.000000e+00> : vector<1x2xf32>
    %44 = tpu.matmul %42, %43, %cst_24 {dimension_numbers = #tpu.dot_dimension_numbers<[1], [0], [0], [1], [0, 0, 1, 1], [], []>} : vector<1x384xbf16>, vector<384x2xbf16>, vector<1x2xf32> -> vector<1x2xf32>
    %c0_25 = arith.constant 0 : index
    %c0_26 = arith.constant 0 : index
    %45 = vector.load %arg9[%c0_25, %c0_26] : memref<1x2xf32, #tpu.memory_space<vmem>>, vector<1x2xf32>
    %46 = arith.addf %44, %45 : vector<1x2xf32>
    %c0_27 = arith.constant 0 : index
    %c0_28 = arith.constant 0 : index
    %c0_29 = arith.constant 0 : index
    %47 = vector.load %arg10[%c0_27, %c0_28, %c0_29] : memref<1x1x2xf32, #tpu.memory_space<vmem>>, vector<1x1x2xf32>
    %48 = vector.shape_cast %47 : vector<1x1x2xf32> to vector<1x2xf32>
    %49 = vector.shape_cast %46 : vector<1x2xf32> to vector<1x1x2xf32>
    tpu.vector_store %arg10[%c0_27, %c0_28, %c0_29], %49 {strides = array<i32>} : memref<1x1x2xf32, #tpu.memory_space<vmem>>, vector<1x1x2xf32>,
    return
  }
  func.func @transform_0(%arg0: i32) -> (i32, i32, i32) {
    %c0_i32 = arith.constant 0 : i32
    %c0_i32_0 = arith.constant 0 : i32
    %c0_i32_1 = arith.constant 0 : i32
    return %arg0, %c0_i32, %c0_i32_0 : i32, i32, i32
  }
  func.func @transform_1(%arg0: i32) -> (i32, i32) {
    %c0_i32 = arith.constant 0 : i32
    %c0_i32_0 = arith.constant 0 : i32
    %c0_i32_1 = arith.constant 0 : i32
    return %c0_i32, %c0_i32_0 : i32, i32
  }
  func.func @transform_2(%arg0: i32) -> (i32, i32) {
    %c0_i32 = arith.constant 0 : i32
    %c0_i32_0 = arith.constant 0 : i32
    %c0_i32_1 = arith.constant 0 : i32
    return %c0_i32, %c0_i32_0 : i32, i32
  }
  func.func @transform_3(%arg0: i32) -> (i32, i32) {
    %c0_i32 = arith.constant 0 : i32
    %c0_i32_0 = arith.constant 0 : i32
    %c0_i32_1 = arith.constant 0 : i32
    return %c0_i32, %c0_i32_0 : i32, i32
  }
  func.func @transform_4(%arg0: i32) -> (i32, i32) {
    %c0_i32 = arith.constant 0 : i32
    %c0_i32_0 = arith.constant 0 : i32
    %c0_i32_1 = arith.constant 0 : i32
    return %c0_i32, %c0_i32_0 : i32, i32
  }
  func.func @transform_5(%arg0: i32) -> (i32, i32) {
    %c0_i32 = arith.constant 0 : i32
    %c0_i32_0 = arith.constant 0 : i32
    %c0_i32_1 = arith.constant 0 : i32
    return %c0_i32, %c0_i32_0 : i32, i32
  }
  func.func @transform_6(%arg0: i32) -> (i32, i32) {
    %c0_i32 = arith.constant 0 : i32
    %c0_i32_0 = arith.constant 0 : i32
    %c0_i32_1 = arith.constant 0 : i32
    return %c0_i32, %c0_i32_0 : i32, i32
  }
  func.func @transform_7(%arg0: i32) -> (i32, i32) {
    %c0_i32 = arith.constant 0 : i32
    %c0_i32_0 = arith.constant 0 : i32
    %c0_i32_1 = arith.constant 0 : i32
    return %c0_i32, %c0_i32_0 : i32, i32
  }
  func.func @transform_8(%arg0: i32) -> (i32, i32) {
    %c0_i32 = arith.constant 0 : i32
    %c0_i32_0 = arith.constant 0 : i32
    %c0_i32_1 = arith.constant 0 : i32
    return %c0_i32, %c0_i32_0 : i32, i32
  }
  func.func @transform_9(%arg0: i32) -> (i32, i32, i32) {
    %c0_i32 = arith.constant 0 : i32
    %c0_i32_0 = arith.constant 0 : i32
    %c0_i32_1 = arith.constant 0 : i32
    return %arg0, %c0_i32, %c0_i32_0 : i32, i32, i32
  }
}

</mosaic_0001>

<llo_original>
// kernel: tpu_custom_call.1
$region0: #{tpu_custom_call.1}
  #allocation0 [shape = 'u32[]', space=smem, size = 0x4, offset = 0x4, fixed_abs, tag = 'smem constant byte address 0x4 - core index']
  #allocation1 [shape = 'u32[72,128]{1,0:T(1,128)}', space=vmem, size = 0x9000, scoped, tag = 'internal scratch']
  %s0 = inlined_call_operand.hbm [shape: bf16[2,8,128], index: 0, kind: input, shape index: {}]
  %s1 = inlined_call_operand.vmem [shape: bf16[384,128], index: 1, kind: input, shape index: {}]
  %s2 = inlined_call_operand.vmem [shape: f32[1,128], index: 2, kind: input, shape index: {}]
  %s3 = inlined_call_operand.hbm [shape: bf16[512,128], index: 3, kind: input, shape index: {}]
  %s4 = inlined_call_operand.vmem [shape: f32[1,128], index: 4, kind: input, shape index: {}]
  %s5 = inlined_call_operand.hbm [shape: bf16[640,128], index: 5, kind: input, shape index: {}]
  %s6 = inlined_call_operand.vmem [shape: f32[1,128], index: 6, kind: input, shape index: {}]
  %s7 = inlined_call_operand.vmem [shape: bf16[384,2], index: 7, kind: input, shape index: {}]
  %s8 = inlined_call_operand.vmem [shape: f32[1,2], index: 8, kind: input, shape index: {}]
  %s9 = inlined_call_operand.hbm [shape: f32[2,1,2], index: 9, kind: output, shape index: {}]
  %s10 = sld [smem:[#allocation0]]
  $region81: #{tpu_custom_call.1} parent=0
    _
  %s12 = ssub.s32 1, %s10
  %s13 = scalar_select 0, %s12, %s10
  $region1: #{tpu_custom_call.1} parent=0
    #allocation2 [shape = 'u8[4096]{0}', space=vmem, size = 0x1000, scoped, tag = 'input window, operand 0']
    #allocation3 [shape = 's32[2]{0}', space=sflag, size = 0x8, scoped, tag = 'scoped memory for tpu_custom_call.1']
    #allocation4 [shape = 's32[2]{0}', space=sflag, size = 0x8, scoped, tag = 'scoped memory for tpu_custom_call.1']
    #allocation5 [shape = 'u8[131072]{0}', space=vmem, size = 0x20000, scoped, tag = 'input window, operand 3, single buffered']
    #allocation6 [shape = 's32[1]{0}', space=sflag, size = 0x4, scoped, tag = 'scoped memory for tpu_custom_call.1']
    #allocation7 [shape = 'u8[163840]{0}', space=vmem, size = 0x28000, scoped, tag = 'input window, operand 5, single buffered']
    #allocation8 [shape = 'u8[1024]{0}', space=vmem, size = 0x400, scoped, tag = 'output window, operand 0']
    %14 = vsyncpa [#allocation3], 0
    %s15 = scalar_lea.sflag [#allocation3], 1
    %16 = vsyncpa %s15, 0
    %17 = vsyncpa [#allocation6], 0
    %18 = vsyncpa [#allocation4], 0
    %s19 = scalar_lea.sflag [#allocation4], 1
    %20 = vsyncpa %s19, 0
    loop: start=0, step=1, limit=4
    $region2: #{tpu_custom_call.1} parent=1 // loop_pre_header
      _
    $region3: #{tpu_custom_call.1} parent=1 // loop_header
      %s22 = sphi 0, %s26
      %p23 = scmp.ge.s32.totalorder %s22, 4
      %s32 = sphi 0, %s34
      %s35 = sphi 0, %s32
      %s36 = sphi 0, %s35
      %s52 = sphi 0, %s36
      %s56 = sphi 0, %s56
      %s58 = sphi 0, %s56
      %s59 = sphi 0, %s58
      %s73 = sphi 0, %s59
      %s77 = sphi 0, %s77
      %s79 = sphi 0, %s77
      %s80 = sphi 0, %s79
      %s94 = sphi 0, %s80
      %s98 = sphi 0, %s98
      %s100 = sphi 0, %s98
      %s101 = sphi 0, %s100
      %s115 = sphi 0, %s101
      %s119 = sphi 0, %s119
      %s121 = sphi 0, %s119
      %s122 = sphi 0, %s121
      %s136 = sphi 0, %s122
      %s140 = sphi 0, %s140
      %s142 = sphi 0, %s140
      %s143 = sphi 0, %s142
      %s157 = sphi 0, %s143
      %s161 = sphi 0, %s161
      %s163 = sphi 0, %s161
      %s164 = sphi 0, %s163
      %s178 = sphi 0, %s164
      %s182 = sphi 0, %s182
      %s184 = sphi 0, %s182
      %s185 = sphi 0, %s184
      %s199 = sphi 0, %s185
      %s203 = sphi 0, %s203
      %s205 = sphi 0, %s203
      %s206 = sphi 0, %s205
      %s220 = sphi 0, %s206
      %s226 = sphi 0, %s228
      %s229 = sphi 0, %s226
      %s230 = sphi 0, %s229
      %s246 = sphi 0, %s230
    $region4: #{tpu_custom_call.1} parent=1 // loop_header_branch
      %25 = sbr.rel (%p23) target = $region8
    $region5: #{tpu_custom_call.1} parent=1 // loop_body
      %s27 = ssub.s32 %s22, 1
      %s28 = ssub.s32 %s22, 2
      %s29 = sadd.s32 %s22, 1
      %s30 = ssub.s32 %s22, %s29
      %p31 = scmp.eq.s32.totalorder %s30, 0
      %s33 = sadd.s32 %s32, 1
      %s34 = scalar_select %p31, %s32, %s33
      %p37 = pneg %p31
      %p38 = scmp.eq.s32.totalorder %s22, 1
      %p39 = por %p37, %p38
      %p40 = scmp.ne.s32.totalorder %s32, %s35
      %p41 = scmp.eq.s32.totalorder %s22, 0
      %p42 = por %p40, %p41
      %p43 = scmp.ne.s32.totalorder %s32, %s35
      %p44 = scmp.eq.s32.totalorder %s27, 1
      %p45 = por %p43, %p44
      %p46 = scmp.ne.s32.totalorder %s35, %s36
      %p47 = scmp.eq.s32.totalorder %s27, 0
      %p48 = por %p46, %p47
      %p49 = scmp.ne.s32.totalorder %s35, %s36
      %p50 = scmp.eq.s32.totalorder %s28, 1
      %p51 = por %p49, %p50
      %p53 = scmp.ne.s32.totalorder %s36, %s52
      %p54 = scmp.eq.s32.totalorder %s28, 0
      %p55 = por %p53, %p54
      %s57 = sadd.s32 %s56, 1
      %p60 = scmp.eq.s32.totalorder %s22, 1
      %p61 = scmp.ne.s32.totalorder %s56, %s58
      %p62 = scmp.eq.s32.totalorder %s22, 0
      %p63 = por %p61, %p62
      %p64 = scmp.ne.s32.totalorder %s56, %s58
      %p65 = scmp.eq.s32.totalorder %s27, 1
      %p66 = por %p64, %p65
      %p67 = scmp.ne.s32.totalorder %s58, %s59
      %p68 = scmp.eq.s32.totalorder %s27, 0
      %p69 = por %p67, %p68
      %p70 = scmp.ne.s32.totalorder %s58, %s59
      %p71 = scmp.eq.s32.totalorder %s28, 1
      %p72 = por %p70, %p71
      %p74 = scmp.ne.s32.totalorder %s59, %s73
      %p75 = scmp.eq.s32.totalorder %s28, 0
      %p76 = por %p74, %p75
      %s78 = sadd.s32 %s77, 1
      %p81 = scmp.eq.s32.totalorder %s22, 1
      %p82 = scmp.ne.s32.totalorder %s77, %s79
      %p83 = scmp.eq.s32.totalorder %s22, 0
      %p84 = por %p82, %p83
      %p85 = scmp.ne.s32.totalorder %s77, %s79
      %p86 = scmp.eq.s32.totalorder %s27, 1
      %p87 = por %p85, %p86
      %p88 = scmp.ne.s32.totalorder %s79, %s80
      %p89 = scmp.eq.s32.totalorder %s27, 0
      %p90 = por %p88, %p89
      %p91 = scmp.ne.s32.totalorder %s79, %s80
      %p92 = scmp.eq.s32.totalorder %s28, 1
      %p93 = por %p91, %p92
      %p95 = scmp.ne.s32.totalorder %s80, %s94
      %p96 = scmp.eq.s32.totalorder %s28, 0
      %p97 = por %p95, %p96
      %s99 = sadd.s32 %s98, 1
      %p102 = scmp.eq.s32.totalorder %s22, 1
      %p103 = scmp.ne.s32.totalorder %s98, %s100
      %p104 = scmp.eq.s32.totalorder %s22, 0
      %p105 = por %p103, %p104
      %p106 = scmp.ne.s32.totalorder %s98, %s100
      %p107 = scmp.eq.s32.totalorder %s27, 1
      %p108 = por %p106, %p107
      %p109 = scmp.ne.s32.totalorder %s100, %s101
      %p110 = scmp.eq.s32.totalorder %s27, 0
      %p111 = por %p109, %p110
      %p112 = scmp.ne.s32.totalorder %s100, %s101
      %p113 = scmp.eq.s32.totalorder %s28, 1
      %p114 = por %p112, %p113
      %p116 = scmp.ne.s32.totalorder %s101, %s115
      %p117 = scmp.eq.s32.totalorder %s28, 0
      %p118 = por %p116, %p117
      %s120 = sadd.s32 %s119, 1
      %p123 = scmp.eq.s32.totalorder %s22, 1
      %p124 = scmp.ne.s32.totalorder %s119, %s121
      %p125 = scmp.eq.s32.totalorder %s22, 0
      %p126 = por %p124, %p125
      %p127 = scmp.ne.s32.totalorder %s119, %s121
      %p128 = scmp.eq.s32.totalorder %s27, 1
      %p129 = por %p127, %p128
      %p130 = scmp.ne.s32.totalorder %s121, %s122
      %p131 = scmp.eq.s32.totalorder %s27, 0
      %p132 = por %p130, %p131
      %p133 = scmp.ne.s32.totalorder %s121, %s122
      %p134 = scmp.eq.s32.totalorder %s28, 1
      %p135 = por %p133, %p134
      %p137 = scmp.ne.s32.totalorder %s122, %s136
      %p138 = scmp.eq.s32.totalorder %s28, 0
      %p139 = por %p137, %p138
      %s141 = sadd.s32 %s140, 1
      %p144 = scmp.eq.s32.totalorder %s22, 1
      %p145 = scmp.ne.s32.totalorder %s140, %s142
      %p146 = scmp.eq.s32.totalorder %s22, 0
      %p147 = por %p145, %p146
      %p148 = scmp.ne.s32.totalorder %s140, %s142
      %p149 = scmp.eq.s32.totalorder %s27, 1
      %p150 = por %p148, %p149
      %p151 = scmp.ne.s32.totalorder %s142, %s143
      %p152 = scmp.eq.s32.totalorder %s27, 0
      %p153 = por %p151, %p152
      %p154 = scmp.ne.s32.totalorder %s142, %s143
      %p155 = scmp.eq.s32.totalorder %s28, 1
      %p156 = por %p154, %p155
      %p158 = scmp.ne.s32.totalorder %s143, %s157
      %p159 = scmp.eq.s32.totalorder %s28, 0
      %p160 = por %p158, %p159
      %s162 = sadd.s32 %s161, 1
      %p165 = scmp.eq.s32.totalorder %s22, 1
      %p166 = scmp.ne.s32.totalorder %s161, %s163
      %p167 = scmp.eq.s32.totalorder %s22, 0
      %p168 = por %p166, %p167
      %p169 = scmp.ne.s32.totalorder %s161, %s163
      %p170 = scmp.eq.s32.totalorder %s27, 1
      %p171 = por %p169, %p170
      %p172 = scmp.ne.s32.totalorder %s163, %s164
      %p173 = scmp.eq.s32.totalorder %s27, 0
      %p174 = por %p172, %p173
      %p175 = scmp.ne.s32.totalorder %s163, %s164
      %p176 = scmp.eq.s32.totalorder %s28, 1
      %p177 = por %p175, %p176
      %p179 = scmp.ne.s32.totalorder %s164, %s178
      %p180 = scmp.eq.s32.totalorder %s28, 0
      %p181 = por %p179, %p180
      %s183 = sadd.s32 %s182, 1
      %p186 = scmp.eq.s32.totalorder %s22, 1
      %p187 = scmp.ne.s32.totalorder %s182, %s184
      %p188 = scmp.eq.s32.totalorder %s22, 0
      %p189 = por %p187, %p188
      %p190 = scmp.ne.s32.totalorder %s182, %s184
      %p191 = scmp.eq.s32.totalorder %s27, 1
      %p192 = por %p190, %p191
      %p193 = scmp.ne.s32.totalorder %s184, %s185
      %p194 = scmp.eq.s32.totalorder %s27, 0
      %p195 = por %p193, %p194
      %p196 = scmp.ne.s32.totalorder %s184, %s185
      %p197 = scmp.eq.s32.totalorder %s28, 1
      %p198 = por %p196, %p197
      %p200 = scmp.ne.s32.totalorder %s185, %s199
      %p201 = scmp.eq.s32.totalorder %s28, 0
      %p202 = por %p200, %p201
      %s204 = sadd.s32 %s203, 1
      %p207 = scmp.eq.s32.totalorder %s22, 1
      %p208 = scmp.ne.s32.totalorder %s203, %s205
      %p209 = scmp.eq.s32.totalorder %s22, 0
      %p210 = por %p208, %p209
      %p211 = scmp.ne.s32.totalorder %s203, %s205
      %p212 = scmp.eq.s32.totalorder %s27, 1
      %p213 = por %p211, %p212
      %p214 = scmp.ne.s32.totalorder %s205, %s206
      %p215 = scmp.eq.s32.totalorder %s27, 0
      %p216 = por %p214, %p215
      %p217 = scmp.ne.s32.totalorder %s205, %s206
      %p218 = scmp.eq.s32.totalorder %s28, 1
      %p219 = por %p217, %p218
      %p221 = scmp.ne.s32.totalorder %s206, %s220
      %p222 = scmp.eq.s32.totalorder %s28, 0
      %p223 = por %p221, %p222
      %s224 = ssub.s32 %s22, %s29
      %p225 = scmp.eq.s32.totalorder %s224, 0
      %s227 = sadd.s32 %s226, 1
      %s228 = scalar_select %p225, %s226, %s227
      %p231 = pneg %p225
      %p232 = scmp.eq.s32.totalorder %s22, 1
      %p233 = por %p231, %p232
      %p234 = scmp.ne.s32.totalorder %s226, %s229
      %p235 = scmp.eq.s32.totalorder %s22, 0
      %p236 = por %p234, %p235
      %p237 = scmp.ne.s32.totalorder %s226, %s229
      %p238 = scmp.eq.s32.totalorder %s27, 1
      %p239 = por %p237, %p238
      %p240 = scmp.ne.s32.totalorder %s229, %s230
      %p241 = scmp.eq.s32.totalorder %s27, 0
      %p242 = por %p240, %p241
      %p243 = scmp.ne.s32.totalorder %s229, %s230
      %p244 = scmp.eq.s32.totalorder %s28, 1
      %p245 = por %p243, %p244
      %p247 = scmp.ne.s32.totalorder %s230, %s246
      %p248 = scmp.eq.s32.totalorder %s28, 0
      %p249 = por %p247, %p248
      %p250 = scmp.le.s32.totalorder 1, %s22
      %p251 = scmp.lt.s32.totalorder %s22, 3
      %p252 = pnand %p250, %p251
      %p253 = pneg %p252
      // Predicated region
      $region9: #{tpu_custom_call.1} parent=5 // pred_check
        _
      $region10: #{tpu_custom_call.1} parent=5 // pred_check_branch
        %255 = sbr.rel (%p252) target = $region12
      $region11: #{tpu_custom_call.1} parent=5 // pred_region
        %s256 = ssub.s32 %s22, 1
        // Predicated region
        $region13: #{tpu_custom_call.1} parent=11 // pred_check
          %p257 = pneg %p69
        $region14: #{tpu_custom_call.1} parent=11 // pred_check_branch
          %259 = sbr.rel (%p257) target = $region16
        $region15: #{tpu_custom_call.1} parent=11 // pred_region
          _
        $region16: #{tpu_custom_call.1} parent=11 // pred_fallthru
          _
        // Predicated region
        $region17: #{tpu_custom_call.1} parent=11 // pred_check
          %p260 = pneg %p90
        $region18: #{tpu_custom_call.1} parent=11 // pred_check_branch
          %262 = sbr.rel (%p260) target = $region20
        $region19: #{tpu_custom_call.1} parent=11 // pred_region
          _
        $region20: #{tpu_custom_call.1} parent=11 // pred_fallthru
          _
        // Predicated region
        $region21: #{tpu_custom_call.1} parent=11 // pred_check
          %p263 = pneg %p111
        $region22: #{tpu_custom_call.1} parent=11 // pred_check_branch
          %265 = sbr.rel (%p263) target = $region24
        $region23: #{tpu_custom_call.1} parent=11 // pred_region
          %267 = vsyncadd [#allocation6], 0
          %s268 = sshll.u32 %s3, 4
          %s269 = int_to_ptr.hbm [resolvable:$true] %s268
          %s270 = sshll.u32 [#allocation5], 4
          %s271 = int_to_ptr.vmem [resolvable:$true] %s270
          %276 = dma.hbm_to_vmem [thread:$0]  %s269, 4096, %s271, [#allocation6], 64, 64, 4
        $region24: #{tpu_custom_call.1} parent=11 // pred_fallthru
          _
        // Predicated region
        $region25: #{tpu_custom_call.1} parent=11 // pred_check
          %p277 = pneg %p132
        $region26: #{tpu_custom_call.1} parent=11 // pred_check_branch
          %279 = sbr.rel (%p277) target = $region28
        $region27: #{tpu_custom_call.1} parent=11 // pred_region
          _
        $region28: #{tpu_custom_call.1} parent=11 // pred_fallthru
          _
        // Predicated region
        $region29: #{tpu_custom_call.1} parent=11 // pred_check
          %p280 = pneg %p153
        $region30: #{tpu_custom_call.1} parent=11 // pred_check_branch
          %282 = sbr.rel (%p280) target = $region32
        $region31: #{tpu_custom_call.1} parent=11 // pred_region
          %284 = vsyncadd [#allocation6], 0
          %s285 = sshll.u32 %s5, 4
          %s286 = int_to_ptr.hbm [resolvable:$true] %s285
          %s287 = sshll.u32 [#allocation7], 4
          %s288 = int_to_ptr.vmem [resolvable:$true] %s287
          %293 = dma.hbm_to_vmem [thread:$0]  %s286, 5120, %s288, [#allocation6], 64, 64, 4
        $region32: #{tpu_custom_call.1} parent=11 // pred_fallthru
          _
        // Predicated region
        $region33: #{tpu_custom_call.1} parent=11 // pred_check
          %p294 = pneg %p174
        $region34: #{tpu_custom_call.1} parent=11 // pred_check_branch
          %296 = sbr.rel (%p294) target = $region36
        $region35: #{tpu_custom_call.1} parent=11 // pred_region
          _
        $region36: #{tpu_custom_call.1} parent=11 // pred_fallthru
          _
        // Predicated region
        $region37: #{tpu_custom_call.1} parent=11 // pred_check
          %p297 = pneg %p195
        $region38: #{tpu_custom_call.1} parent=11 // pred_check_branch
          %299 = sbr.rel (%p297) target = $region40
        $region39: #{tpu_custom_call.1} parent=11 // pred_region
          _
        $region40: #{tpu_custom_call.1} parent=11 // pred_fallthru
          _
        // Predicated region
        $region41: #{tpu_custom_call.1} parent=11 // pred_check
          %p300 = pneg %p216
        $region42: #{tpu_custom_call.1} parent=11 // pred_check_branch
          %302 = sbr.rel (%p300) target = $region44
        $region43: #{tpu_custom_call.1} parent=11 // pred_region
          _
        $region44: #{tpu_custom_call.1} parent=11 // pred_fallthru
          _
      $region12: #{tpu_custom_call.1} parent=5 // pred_fallthru
        _
      %p303 = scmp.lt.s32.totalorder %s22, 2
      // Predicated region
      $region45: #{tpu_custom_call.1} parent=5 // pred_check
        %p304 = pneg %p303
      $region46: #{tpu_custom_call.1} parent=5 // pred_check_branch
        %306 = sbr.rel (%p304) target = $region48
      $region47: #{tpu_custom_call.1} parent=5 // pred_region
        // Predicated region
        $region49: #{tpu_custom_call.1} parent=47 // pred_check
          %p307 = pneg %p42
        $region50: #{tpu_custom_call.1} parent=47 // pred_check_branch
          %309 = sbr.rel (%p307) target = $region52
        $region51: #{tpu_custom_call.1} parent=47 // pred_region
          %s310 = sand.u32 %s32, 1
          %s311 = scalar_lea.sflag [#allocation3], %s310
          %s312 = sand.u32 %s32, 1
          %s313 = smul.addr %s312, 4
          %s314 = scalar_lea.vmem [#allocation2], %s313
          %316 = vsyncadd %s311, 0
          %s317 = smul.addr %s22, 4
          %s318 = scalar_lea.hbm %s0, %s317
          %s320 = sshll.u32 %s318, 4
          %s321 = int_to_ptr.hbm [resolvable:$true] %s320
          %s322 = sshll.u32 %s314, 4
          %s323 = int_to_ptr.vmem [resolvable:$true] %s322
          %325 = dma.hbm_to_vmem [thread:$0]  %s321, 64, %s323, %s311
        $region52: #{tpu_custom_call.1} parent=47 // pred_fallthru
          _
      $region48: #{tpu_custom_call.1} parent=5 // pred_fallthru
        _
      %p326 = scmp.le.s32.totalorder 1, %s22
      %p327 = scmp.lt.s32.totalorder %s22, 3
      %p328 = pnand %p326, %p327
      %p329 = pneg %p328
      // Predicated region
      $region53: #{tpu_custom_call.1} parent=5 // pred_check
        _
      $region54: #{tpu_custom_call.1} parent=5 // pred_check_branch
        %331 = sbr.rel (%p328) target = $region56
      $region55: #{tpu_custom_call.1} parent=5 // pred_region
        %s332 = ssub.s32 %s22, 1
        %s333 = sand.u32 %s35, 1
        %s334 = scalar_lea.sflag [#allocation3], %s333
        %s335 = sand.u32 %s35, 1
        %s336 = smul.addr %s335, 4
        %s337 = scalar_lea.vmem [#allocation2], %s336
        // Predicated region
        $region57: #{tpu_custom_call.1} parent=55 // pred_check
          %p338 = pneg %p48
        $region58: #{tpu_custom_call.1} parent=55 // pred_check_branch
          %340 = sbr.rel (%p338) target = $region60
        $region59: #{tpu_custom_call.1} parent=55 // pred_region
          %342 = dma.done %s334, 64
        $region60: #{tpu_custom_call.1} parent=55 // pred_fallthru
          _
        // Predicated region
        $region61: #{tpu_custom_call.1} parent=55 // pred_check
          %p343 = pneg %p111
        $region62: #{tpu_custom_call.1} parent=55 // pred_check_branch
          %345 = sbr.rel (%p343) target = $region64
        $region63: #{tpu_custom_call.1} parent=55 // pred_region
          %347 = dma.done [#allocation6], 4096
        $region64: #{tpu_custom_call.1} parent=55 // pred_fallthru
          _
        // Predicated region
        $region65: #{tpu_custom_call.1} parent=55 // pred_check
          %p348 = pneg %p153
        $region66: #{tpu_custom_call.1} parent=55 // pred_check_branch
          %350 = sbr.rel (%p348) target = $region68
        $region67: #{tpu_custom_call.1} parent=55 // pred_region
          %352 = dma.done [#allocation6], 5120
        $region68: #{tpu_custom_call.1} parent=55 // pred_fallthru
          _
        %s353 = sand.u32 %s35, 1
        %s354 = scalar_lea.sflag [#allocation3], %s353
        %s355 = sand.u32 %s35, 1
        %s356 = smul.addr %s355, 4
        %s357 = scalar_lea.vmem [#allocation2], %s356
        %p358 = pneg %p48
        %p359 = pneg %p45
        %p360 = pneg %p69
        %p361 = pneg %p66
        %p362 = pneg %p90
        %p363 = pneg %p87
        %p364 = pneg %p111
        %p365 = pneg %p108
        %p366 = pneg %p132
        %p367 = pneg %p129
        %p368 = pneg %p153
        %p369 = pneg %p150
        %p370 = pneg %p174
        %p371 = pneg %p171
        %p372 = pneg %p195
        %p373 = pneg %p192
        %p374 = pneg %p216
        %p375 = pneg %p213
        %p376 = pneg %p242
        %p377 = pneg %p239
        %s378 = sand.u32 %s229, 1
        %s379 = scalar_lea.sflag [#allocation4], %s378
        %s380 = sand.u32 %s229, 1
        %s381 = scalar_lea.vmem [#allocation8], %s380
        %v382 = vld [vmem:[%s337] sm:$0xf]
        %v384 = vunpack.c.l.b16 %v382
        %v385 = vpack.c.b16 %v384, %v384
        %v387 = vshrl.u32 %v385, 16
        %v389 = vshll.u32 %v385, 16
        %v391 = vrot.slane %v389, 1
        %v392 = vor.u32 %v387, %v391
        %v394 = vrot.slane %v385, 1
        %v396 = vld [vmem:[%s1] sm:$0xf]
        %v397 = vld [vmem:[%s1 + $0x4] sm:$0xf]
        %v398 = vld [vmem:[%s1 + $0x8] sm:$0xf]
        %v399 = vld [vmem:[%s1 + $0xc] sm:$0xf]
        %v400 = vld [vmem:[%s1 + $0x10] sm:$0xf]
        %v401 = vld [vmem:[%s1 + $0x14] sm:$0xf]
        %v402 = vld [vmem:[%s1 + $0x18] sm:$0xf]
        %v403 = vld [vmem:[%s1 + $0x1c] sm:$0xf]
        %v404 = vld [vmem:[%s1 + $0x20] sm:$0xf]
        %v405 = vld [vmem:[%s1 + $0x24] sm:$0xf]
        %v406 = vld [vmem:[%s1 + $0x28] sm:$0xf]
        %v407 = vld [vmem:[%s1 + $0x2c] sm:$0xf]
        %v408 = vld [vmem:[%s1 + $0x30] sm:$0xf]
        %v409 = vld [vmem:[%s1 + $0x34] sm:$0xf]
        %v410 = vld [vmem:[%s1 + $0x38] sm:$0xf]
        %v411 = vld [vmem:[%s1 + $0x3c] sm:$0xf]
        %v412 = vld [vmem:[%s1 + $0x40] sm:$0xf]
        %v413 = vld [vmem:[%s1 + $0x44] sm:$0xf]
        %v414 = vld [vmem:[%s1 + $0x48] sm:$0xf]
        %v415 = vld [vmem:[%s1 + $0x4c] sm:$0xf]
        %v416 = vld [vmem:[%s1 + $0x50] sm:$0xf]
        %v417 = vld [vmem:[%s1 + $0x54] sm:$0xf]
        %v418 = vld [vmem:[%s1 + $0x58] sm:$0xf]
        %v419 = vld [vmem:[%s1 + $0x5c] sm:$0xf]
        %v420 = vld [vmem:[%s1 + $0x60] sm:$0xf]
        %v421 = vld [vmem:[%s1 + $0x64] sm:$0xf]
        %v422 = vld [vmem:[%s1 + $0x68] sm:$0xf]
        %v423 = vld [vmem:[%s1 + $0x6c] sm:$0xf]
        %v424 = vld [vmem:[%s1 + $0x70] sm:$0xf]
        %v425 = vld [vmem:[%s1 + $0x74] sm:$0xf]
        %v426 = vld [vmem:[%s1 + $0x78] sm:$0xf]
        %v427 = vld [vmem:[%s1 + $0x7c] sm:$0xf]
        %v428 = vld [vmem:[%s1 + $0x80] sm:$0xf]
        %v429 = vld [vmem:[%s1 + $0x84] sm:$0xf]
        %v430 = vld [vmem:[%s1 + $0x88] sm:$0xf]
        %v431 = vld [vmem:[%s1 + $0x8c] sm:$0xf]
        %v432 = vld [vmem:[%s1 + $0x90] sm:$0xf]
        %v433 = vld [vmem:[%s1 + $0x94] sm:$0xf]
        %v434 = vld [vmem:[%s1 + $0x98] sm:$0xf]
        %v435 = vld [vmem:[%s1 + $0x9c] sm:$0xf]
        %v436 = vld [vmem:[%s1 + $0xa0] sm:$0xf]
        %v437 = vld [vmem:[%s1 + $0xa4] sm:$0xf]
        %v438 = vld [vmem:[%s1 + $0xa8] sm:$0xf]
        %v439 = vld [vmem:[%s1 + $0xac] sm:$0xf]
        %v440 = vld [vmem:[%s1 + $0xb0] sm:$0xf]
        %v441 = vld [vmem:[%s1 + $0xb4] sm:$0xf]
        %v442 = vld [vmem:[%s1 + $0xb8] sm:$0xf]
        %v443 = vld [vmem:[%s1 + $0xbc] sm:$0xf]
        %v492 = vunpack.c.l.b16 %v396
        %v493 = vunpack.c.l.b16 %v397
        %v494 = vunpack.c.l.b16 %v398
        %v495 = vunpack.c.l.b16 %v399
        %v496 = vunpack.c.l.b16 %v400
        %v497 = vunpack.c.l.b16 %v401
        %v498 = vunpack.c.l.b16 %v402
        %v499 = vunpack.c.l.b16 %v403
        %v500 = vunpack.c.l.b16 %v404
        %v501 = vunpack.c.l.b16 %v405
        %v502 = vunpack.c.l.b16 %v406
        %v503 = vunpack.c.l.b16 %v407
        %v504 = vunpack.c.l.b16 %v408
        %v505 = vunpack.c.l.b16 %v409
        %v506 = vunpack.c.l.b16 %v410
        %v507 = vunpack.c.l.b16 %v411
        %v508 = vunpack.c.l.b16 %v412
        %v509 = vunpack.c.l.b16 %v413
        %v510 = vunpack.c.l.b16 %v414
        %v511 = vunpack.c.l.b16 %v415
        %v512 = vunpack.c.l.b16 %v416
        %v513 = vunpack.c.l.b16 %v417
        %v514 = vunpack.c.l.b16 %v418
        %v515 = vunpack.c.l.b16 %v419
        %v516 = vunpack.c.l.b16 %v420
        %v517 = vunpack.c.l.b16 %v421
        %v518 = vunpack.c.l.b16 %v422
        %v519 = vunpack.c.l.b16 %v423
        %v520 = vunpack.c.l.b16 %v424
        %v521 = vunpack.c.l.b16 %v425
        %v522 = vunpack.c.l.b16 %v426
        %v523 = vunpack.c.l.b16 %v427
        %v524 = vunpack.c.l.b16 %v428
        %v525 = vunpack.c.l.b16 %v429
        %v526 = vunpack.c.l.b16 %v430
        %v527 = vunpack.c.l.b16 %v431
        %v528 = vunpack.c.l.b16 %v432
        %v529 = vunpack.c.l.b16 %v433
        %v530 = vunpack.c.l.b16 %v434
        %v531 = vunpack.c.l.b16 %v435
        %v532 = vunpack.c.l.b16 %v436
        %v533 = vunpack.c.l.b16 %v437
        %v534 = vunpack.c.l.b16 %v438
        %v535 = vunpack.c.l.b16 %v439
        %v536 = vunpack.c.l.b16 %v440
        %v537 = vunpack.c.l.b16 %v441
        %v538 = vunpack.c.l.b16 %v442
        %v539 = vunpack.c.l.b16 %v443
        %v540 = vpack.c.b16 %v493, %v492
        %v541 = vpack.c.b16 %v495, %v494
        %v542 = vpack.c.b16 %v497, %v496
        %v543 = vpack.c.b16 %v499, %v498
        %v544 = vpack.c.b16 %v501, %v500
        %v545 = vpack.c.b16 %v503, %v502
        %v546 = vpack.c.b16 %v505, %v504
        %v547 = vpack.c.b16 %v507, %v506
        %v548 = vpack.c.b16 %v509, %v508
        %v549 = vpack.c.b16 %v511, %v510
        %v550 = vpack.c.b16 %v513, %v512
        %v551 = vpack.c.b16 %v515, %v514
        %v552 = vpack.c.b16 %v517, %v516
        %v553 = vpack.c.b16 %v519, %v518
        %v554 = vpack.c.b16 %v521, %v520
        %v555 = vpack.c.b16 %v523, %v522
        %v556 = vpack.c.b16 %v525, %v524
        %v557 = vpack.c.b16 %v527, %v526
        %v558 = vpack.c.b16 %v529, %v528
        %v559 = vpack.c.b16 %v531, %v530
        %v560 = vpack.c.b16 %v533, %v532
        %v561 = vpack.c.b16 %v535, %v534
        %v562 = vpack.c.b16 %v537, %v536
        %v563 = vpack.c.b16 %v539, %v538
        %588 = vmatpush.bf16.msra.mxu0 %v547
        %589 = vmatpush.bf16.msra.mxu0 %v546
        %590 = vmatpush.bf16.msra.mxu0 %v545
        %591 = vmatpush.bf16.msra.mxu0 %v544
        %592 = vmatpush.bf16.msra.mxu0 %v543
        %593 = vmatpush.bf16.msra.mxu0 %v542
        %594 = vmatpush.bf16.msra.mxu0 %v541
        %595 = vmatpush.bf16.msra.mxu0 %v540
        %596 = vmatmul.bf16.gmra.mxu0 %v382
        %v597 = vpop.f32.mrf.mxu0
        %v598 = vadd.f32 0.0, %v597
        %v599 = vpop.f32.mrf.mxu0
        %600 = vdwg.mxu0
        %601 = vmatpush.bf16.msra.mxu0 %v555
        %602 = vmatpush.bf16.msra.mxu0 %v554
        %603 = vmatpush.bf16.msra.mxu0 %v553
        %604 = vmatpush.bf16.msra.mxu0 %v552
        %605 = vmatpush.bf16.msra.mxu0 %v551
        %606 = vmatpush.bf16.msra.mxu0 %v550
        %607 = vmatpush.bf16.msra.mxu0 %v549
        %608 = vmatpush.bf16.msra.mxu0 %v548
        %609 = vmatmul.bf16.gmra.mxu0 %v392
        %v610 = vpop.f32.mrf.mxu0
        %v611 = vadd.f32 %v598, %v610
        %v612 = vpop.f32.mrf.mxu0
        %613 = vdwg.mxu0
        %614 = vmatpush.bf16.msra.mxu0 %v563
        %615 = vmatpush.bf16.msra.mxu0 %v562
        %616 = vmatpush.bf16.msra.mxu0 %v561
        %617 = vmatpush.bf16.msra.mxu0 %v560
        %618 = vmatpush.bf16.msra.mxu0 %v559
        %619 = vmatpush.bf16.msra.mxu0 %v558
        %620 = vmatpush.bf16.msra.mxu0 %v557
        %621 = vmatpush.bf16.msra.mxu0 %v556
        %622 = vmatmul.bf16.gmra.mxu0 %v394
        %v623 = vpop.f32.mrf.mxu0
        %v624 = vadd.f32 %v611, %v623
        %v625 = vpop.f32.mrf.mxu0
        %626 = vdwg.mxu0
        %vm627 = vcmask 1045504
        %v628 = vsel %vm627, %v624, -inf
        %v629 = vrot.slane %v628, 4
        %v630 = vmax.f32 %v628, %v629
        %v631 = vrot.slane %v630, 2
        %v632 = vmax.f32 %v630, %v631
        %v633 = vrot.slane %v632, 1
        %v634 = vmax.f32 %v632, %v633
        %v635 = vld [vmem:[%s2] sm:$0x1]
        %v636 = vadd.f32 %v634, %v635
        %v637 = vmax.f32 %v636, 0.0
        %v638 = vrot.slane %v387, 1
        %v639 = vrot.slane %v389, 2
        %v640 = vor.u32 %v638, %v639
        %v642 = vld [vmem:[#allocation5] sm:$0xf]
        %v643 = vld [vmem:[#allocation5 + $0x4] sm:$0xf]
        %v644 = vld [vmem:[#allocation5 + $0x8] sm:$0xf]
        %v645 = vld [vmem:[#allocation5 + $0xc] sm:$0xf]
        %v646 = vld [vmem:[#allocation5 + $0x10] sm:$0xf]
        %v647 = vld [vmem:[#allocation5 + $0x14] sm:$0xf]
        %v648 = vld [vmem:[#allocation5 + $0x18] sm:$0xf]
        %v649 = vld [vmem:[#allocation5 + $0x1c] sm:$0xf]
        %v650 = vld [vmem:[#allocation5 + $0x20] sm:$0xf]
        %v651 = vld [vmem:[#allocation5 + $0x24] sm:$0xf]
        %v652 = vld [vmem:[#allocation5 + $0x28] sm:$0xf]
        %v653 = vld [vmem:[#allocation5 + $0x2c] sm:$0xf]
        %v654 = vld [vmem:[#allocation5 + $0x30] sm:$0xf]
        %v655 = vld [vmem:[#allocation5 + $0x34] sm:$0xf]
        %v656 = vld [vmem:[#allocation5 + $0x38] sm:$0xf]
        %v657 = vld [vmem:[#allocation5 + $0x3c] sm:$0xf]
        %v658 = vld [vmem:[#allocation5 + $0x40] sm:$0xf]
        %v659 = vld [vmem:[#allocation5 + $0x44] sm:$0xf]
        %v660 = vld [vmem:[#allocation5 + $0x48] sm:$0xf]
        %v661 = vld [vmem:[#allocation5 + $0x4c] sm:$0xf]
        %v662 = vld [vmem:[#allocation5 + $0x50] sm:$0xf]
        %v663 = vld [vmem:[#allocation5 + $0x54] sm:$0xf]
        %v664 = vld [vmem:[#allocation5 + $0x58] sm:$0xf]
        %v665 = vld [vmem:[#allocation5 + $0x5c] sm:$0xf]
        %v666 = vld [vmem:[#allocation5 + $0x60] sm:$0xf]
        %v667 = vld [vmem:[#allocation5 + $0x64] sm:$0xf]
        %v668 = vld [vmem:[#allocation5 + $0x68] sm:$0xf]
        %v669 = vld [vmem:[#allocation5 + $0x6c] sm:$0xf]
        %v670 = vld [vmem:[#allocation5 + $0x70] sm:$0xf]
        %v671 = vld [vmem:[#allocation5 + $0x74] sm:$0xf]
        %v672 = vld [vmem:[#allocation5 + $0x78] sm:$0xf]
        %v673 = vld [vmem:[#allocation5 + $0x7c] sm:$0xf]
        %v674 = vld [vmem:[#allocation5 + $0x80] sm:$0xf]
        %v675 = vld [vmem:[#allocation5 + $0x84] sm:$0xf]
        %v676 = vld [vmem:[#allocation5 + $0x88] sm:$0xf]
        %v677 = vld [vmem:[#allocation5 + $0x8c] sm:$0xf]
        %v678 = vld [vmem:[#allocation5 + $0x90] sm:$0xf]
        %v679 = vld [vmem:[#allocation5 + $0x94] sm:$0xf]
        %v680 = vld [vmem:[#allocation5 + $0x98] sm:$0xf]
        %v681 = vld [vmem:[#allocation5 + $0x9c] sm:$0xf]
        %v682 = vld [vmem:[#allocation5 + $0xa0] sm:$0xf]
        %v683 = vld [vmem:[#allocation5 + $0xa4] sm:$0xf]
        %v684 = vld [vmem:[#allocation5 + $0xa8] sm:$0xf]
        %v685 = vld [vmem:[#allocation5 + $0xac] sm:$0xf]
        %v686 = vld [vmem:[#allocation5 + $0xb0] sm:$0xf]
        %v687 = vld [vmem:[#allocation5 + $0xb4] sm:$0xf]
        %v688 = vld [vmem:[#allocation5 + $0xb8] sm:$0xf]
        %v689 = vld [vmem:[#allocation5 + $0xbc] sm:$0xf]
        %v690 = vld [vmem:[#allocation5 + $0xc0] sm:$0xf]
        %v691 = vld [vmem:[#allocation5 + $0xc4] sm:$0xf]
        %v692 = vld [vmem:[#allocation5 + $0xc8] sm:$0xf]
        %v693 = vld [vmem:[#allocation5 + $0xcc] sm:$0xf]
        %v694 = vld [vmem:[#allocation5 + $0xd0] sm:$0xf]
        %v695 = vld [vmem:[#allocation5 + $0xd4] sm:$0xf]
        %v696 = vld [vmem:[#allocation5 + $0xd8] sm:$0xf]
        %v697 = vld [vmem:[#allocation5 + $0xdc] sm:$0xf]
        %v698 = vld [vmem:[#allocation5 + $0xe0] sm:$0xf]
        %v699 = vld [vmem:[#allocation5 + $0xe4] sm:$0xf]
        %v700 = vld [vmem:[#allocation5 + $0xe8] sm:$0xf]
        %v701 = vld [vmem:[#allocation5 + $0xec] sm:$0xf]
        %v702 = vld [vmem:[#allocation5 + $0xf0] sm:$0xf]
        %v703 = vld [vmem:[#allocation5 + $0xf4] sm:$0xf]
        %v704 = vld [vmem:[#allocation5 + $0xf8] sm:$0xf]
        %v705 = vld [vmem:[#allocation5 + $0xfc] sm:$0xf]
        %v770 = vunpack.c.l.b16 %v642
        %v771 = vunpack.c.l.b16 %v643
        %v772 = vunpack.c.l.b16 %v644
        %v773 = vunpack.c.l.b16 %v645
        %v774 = vunpack.c.l.b16 %v646
        %v775 = vunpack.c.l.b16 %v647
        %v776 = vunpack.c.l.b16 %v648
        %v777 = vunpack.c.l.b16 %v649
        %v778 = vunpack.c.l.b16 %v650
        %v779 = vunpack.c.l.b16 %v651
        %v780 = vunpack.c.l.b16 %v652
        %v781 = vunpack.c.l.b16 %v653
        %v782 = vunpack.c.l.b16 %v654
        %v783 = vunpack.c.l.b16 %v655
        %v784 = vunpack.c.l.b16 %v656
        %v785 = vunpack.c.l.b16 %v657
        %v786 = vunpack.c.l.b16 %v658
        %v787 = vunpack.c.l.b16 %v659
        %v788 = vunpack.c.l.b16 %v660
        %v789 = vunpack.c.l.b16 %v661
        %v790 = vunpack.c.l.b16 %v662
        %v791 = vunpack.c.l.b16 %v663
        %v792 = vunpack.c.l.b16 %v664
        %v793 = vunpack.c.l.b16 %v665
        %v794 = vunpack.c.l.b16 %v666
        %v795 = vunpack.c.l.b16 %v667
        %v796 = vunpack.c.l.b16 %v668
        %v797 = vunpack.c.l.b16 %v669
        %v798 = vunpack.c.l.b16 %v670
        %v799 = vunpack.c.l.b16 %v671
        %v800 = vunpack.c.l.b16 %v672
        %v801 = vunpack.c.l.b16 %v673
        %v802 = vunpack.c.l.b16 %v674
        %v803 = vunpack.c.l.b16 %v675
        %v804 = vunpack.c.l.b16 %v676
        %v805 = vunpack.c.l.b16 %v677
        %v806 = vunpack.c.l.b16 %v678
        %v807 = vunpack.c.l.b16 %v679
        %v808 = vunpack.c.l.b16 %v680
        %v809 = vunpack.c.l.b16 %v681
        %v810 = vunpack.c.l.b16 %v682
        %v811 = vunpack.c.l.b16 %v683
        %v812 = vunpack.c.l.b16 %v684
        %v813 = vunpack.c.l.b16 %v685
        %v814 = vunpack.c.l.b16 %v686
        %v815 = vunpack.c.l.b16 %v687
        %v816 = vunpack.c.l.b16 %v688
        %v817 = vunpack.c.l.b16 %v689
        %v818 = vunpack.c.l.b16 %v690
        %v819 = vunpack.c.l.b16 %v691
        %v820 = vunpack.c.l.b16 %v692
        %v821 = vunpack.c.l.b16 %v693
        %v822 = vunpack.c.l.b16 %v694
        %v823 = vunpack.c.l.b16 %v695
        %v824 = vunpack.c.l.b16 %v696
        %v825 = vunpack.c.l.b16 %v697
        %v826 = vunpack.c.l.b16 %v698
        %v827 = vunpack.c.l.b16 %v699
        %v828 = vunpack.c.l.b16 %v700
        %v829 = vunpack.c.l.b16 %v701
        %v830 = vunpack.c.l.b16 %v702
        %v831 = vunpack.c.l.b16 %v703
        %v832 = vunpack.c.l.b16 %v704
        %v833 = vunpack.c.l.b16 %v705
        %v834 = vpack.c.b16 %v771, %v770
        %v835 = vpack.c.b16 %v773, %v772
        %v836 = vpack.c.b16 %v775, %v774
        %v837 = vpack.c.b16 %v777, %v776
        %v838 = vpack.c.b16 %v779, %v778
        %v839 = vpack.c.b16 %v781, %v780
        %v840 = vpack.c.b16 %v783, %v782
        %v841 = vpack.c.b16 %v785, %v784
        %v842 = vpack.c.b16 %v787, %v786
        %v843 = vpack.c.b16 %v789, %v788
        %v844 = vpack.c.b16 %v791, %v790
        %v845 = vpack.c.b16 %v793, %v792
        %v846 = vpack.c.b16 %v795, %v794
        %v847 = vpack.c.b16 %v797, %v796
        %v848 = vpack.c.b16 %v799, %v798
        %v849 = vpack.c.b16 %v801, %v800
        %v850 = vpack.c.b16 %v803, %v802
        %v851 = vpack.c.b16 %v805, %v804
        %v852 = vpack.c.b16 %v807, %v806
        %v853 = vpack.c.b16 %v809, %v808
        %v854 = vpack.c.b16 %v811, %v810
        %v855 = vpack.c.b16 %v813, %v812
        %v856 = vpack.c.b16 %v815, %v814
        %v857 = vpack.c.b16 %v817, %v816
        %v858 = vpack.c.b16 %v819, %v818
        %v859 = vpack.c.b16 %v821, %v820
        %v860 = vpack.c.b16 %v823, %v822
        %v861 = vpack.c.b16 %v825, %v824
        %v862 = vpack.c.b16 %v827, %v826
        %v863 = vpack.c.b16 %v829, %v828
        %v864 = vpack.c.b16 %v831, %v830
        %v865 = vpack.c.b16 %v833, %v832
        %898 = vmatpush.bf16.msra.mxu0 %v841
        %899 = vmatpush.bf16.msra.mxu0 %v840
        %900 = vmatpush.bf16.msra.mxu0 %v839
        %901 = vmatpush.bf16.msra.mxu0 %v838
        %902 = vmatpush.bf16.msra.mxu0 %v837
        %903 = vmatpush.bf16.msra.mxu0 %v836
        %904 = vmatpush.bf16.msra.mxu0 %v835
        %905 = vmatpush.bf16.msra.mxu0 %v834
        %906 = vmatmul.bf16.gmra.mxu0 %v382
        %v907 = vpop.f32.mrf.mxu0
        %v908 = vadd.f32 0.0, %v907
        %v909 = vpop.f32.mrf.mxu0
        %910 = vdwg.mxu0
        %911 = vmatpush.bf16.msra.mxu0 %v849
        %912 = vmatpush.bf16.msra.mxu0 %v848
        %913 = vmatpush.bf16.msra.mxu0 %v847
        %914 = vmatpush.bf16.msra.mxu0 %v846
        %915 = vmatpush.bf16.msra.mxu0 %v845
        %916 = vmatpush.bf16.msra.mxu0 %v844
        %917 = vmatpush.bf16.msra.mxu0 %v843
        %918 = vmatpush.bf16.msra.mxu0 %v842
        %919 = vmatmul.bf16.gmra.mxu0 %v392
        %v920 = vpop.f32.mrf.mxu0
        %v921 = vadd.f32 %v908, %v920
        %v922 = vpop.f32.mrf.mxu0
        %923 = vdwg.mxu0
        %924 = vmatpush.bf16.msra.mxu0 %v857
        %925 = vmatpush.bf16.msra.mxu0 %v856
        %926 = vmatpush.bf16.msra.mxu0 %v855
        %927 = vmatpush.bf16.msra.mxu0 %v854
        %928 = vmatpush.bf16.msra.mxu0 %v853
        %929 = vmatpush.bf16.msra.mxu0 %v852
        %930 = vmatpush.bf16.msra.mxu0 %v851
        %931 = vmatpush.bf16.msra.mxu0 %v850
        %932 = vmatmul.bf16.gmra.mxu0 %v394
        %v933 = vpop.f32.mrf.mxu0
        %v934 = vadd.f32 %v921, %v933
        %v935 = vpop.f32.mrf.mxu0
        %936 = vdwg.mxu0
        %937 = vmatpush.bf16.msra.mxu0 %v865
        %938 = vmatpush.bf16.msra.mxu0 %v864
        %939 = vmatpush.bf16.msra.mxu0 %v863
        %940 = vmatpush.bf16.msra.mxu0 %v862
        %941 = vmatpush.bf16.msra.mxu0 %v861
        %942 = vmatpush.bf16.msra.mxu0 %v860
        %943 = vmatpush.bf16.msra.mxu0 %v859
        %944 = vmatpush.bf16.msra.mxu0 %v858
        %945 = vmatmul.bf16.gmra.mxu0 %v640
        %v946 = vpop.f32.mrf.mxu0
        %v947 = vadd.f32 %v934, %v946
        %v948 = vpop.f32.mrf.mxu0
        %949 = vdwg.mxu0
        %vm950 = vcmask 1044480
        %v951 = vsel %vm950, %v947, -inf
        %v952 = vrot.slane %v951, 4
        %v953 = vmax.f32 %v951, %v952
        %v954 = vrot.slane %v953, 2
        %v955 = vmax.f32 %v953, %v954
        %v956 = vrot.slane %v955, 1
        %v957 = vmax.f32 %v955, %v956
        %v958 = vld [vmem:[%s4] sm:$0x1]
        %v959 = vadd.f32 %v957, %v958
        %v960 = vmax.f32 %v959, 0.0
        %v961 = vrot.slane %v385, 2
        %v963 = vld [vmem:[#allocation7] sm:$0xf]
        %v964 = vld [vmem:[#allocation7 + $0x4] sm:$0xf]
        %v965 = vld [vmem:[#allocation7 + $0x8] sm:$0xf]
        %v966 = vld [vmem:[#allocation7 + $0xc] sm:$0xf]
        %v967 = vld [vmem:[#allocation7 + $0x10] sm:$0xf]
        %v968 = vld [vmem:[#allocation7 + $0x14] sm:$0xf]
        %v969 = vld [vmem:[#allocation7 + $0x18] sm:$0xf]
        %v970 = vld [vmem:[#allocation7 + $0x1c] sm:$0xf]
        %v971 = vld [vmem:[#allocation7 + $0x20] sm:$0xf]
        %v972 = vld [vmem:[#allocation7 + $0x24] sm:$0xf]
        %v973 = vld [vmem:[#allocation7 + $0x28] sm:$0xf]
        %v974 = vld [vmem:[#allocation7 + $0x2c] sm:$0xf]
        %v975 = vld [vmem:[#allocation7 + $0x30] sm:$0xf]
        %v976 = vld [vmem:[#allocation7 + $0x34] sm:$0xf]
        %v977 = vld [vmem:[#allocation7 + $0x38] sm:$0xf]
        %v978 = vld [vmem:[#allocation7 + $0x3c] sm:$0xf]
        %v979 = vld [vmem:[#allocation7 + $0x40] sm:$0xf]
        %v980 = vld [vmem:[#allocation7 + $0x44] sm:$0xf]
        %v981 = vld [vmem:[#allocation7 + $0x48] sm:$0xf]
        %v982 = vld [vmem:[#allocation7 + $0x4c] sm:$0xf]
        %v983 = vld [vmem:[#allocation7 + $0x50] sm:$0xf]
        %v984 = vld [vmem:[#allocation7 + $0x54] sm:$0xf]
        %v985 = vld [vmem:[#allocation7 + $0x58] sm:$0xf]
        %v986 = vld [vmem:[#allocation7 + $0x5c] sm:$0xf]
        %v987 = vld [vmem:[#allocation7 + $0x60] sm:$0xf]
        %v988 = vld [vmem:[#allocation7 + $0x64] sm:$0xf]
        %v989 = vld [vmem:[#allocation7 + $0x68] sm:$0xf]
        %v990 = vld [vmem:[#allocation7 + $0x6c] sm:$0xf]
        %v991 = vld [vmem:[#allocation7 + $0x70] sm:$0xf]
        %v992 = vld [vmem:[#allocation7 + $0x74] sm:$0xf]
        %v993 = vld [vmem:[#allocation7 + $0x78] sm:$0xf]
        %v994 = vld [vmem:[#allocation7 + $0x7c] sm:$0xf]
        %v995 = vld [vmem:[#allocation7 + $0x80] sm:$0xf]
        %v996 = vld [vmem:[#allocation7 + $0x84] sm:$0xf]
        %v997 = vld [vmem:[#allocation7 + $0x88] sm:$0xf]
        %v998 = vld [vmem:[#allocation7 + $0x8c] sm:$0xf]
        %v999 = vld [vmem:[#allocation7 + $0x90] sm:$0xf]
        %v1000 = vld [vmem:[#allocation7 + $0x94] sm:$0xf]
        %v1001 = vld [vmem:[#allocation7 + $0x98] sm:$0xf]
        %v1002 = vld [vmem:[#allocation7 + $0x9c] sm:$0xf]
        %v1003 = vld [vmem:[#allocation7 + $0xa0] sm:$0xf]
        %v1004 = vld [vmem:[#allocation7 + $0xa4] sm:$0xf]
        %v1005 = vld [vmem:[#allocation7 + $0xa8] sm:$0xf]
        %v1006 = vld [vmem:[#allocation7 + $0xac] sm:$0xf]
        %v1007 = vld [vmem:[#allocation7 + $0xb0] sm:$0xf]
        %v1008 = vld [vmem:[#allocation7 + $0xb4] sm:$0xf]
        %v1009 = vld [vmem:[#allocation7 + $0xb8] sm:$0xf]
        %v1010 = vld [vmem:[#allocation7 + $0xbc] sm:$0xf]
        %v1011 = vld [vmem:[#allocation7 + $0xc0] sm:$0xf]
        %v1012 = vld [vmem:[#allocation7 + $0xc4] sm:$0xf]
        %v1013 = vld [vmem:[#allocation7 + $0xc8] sm:$0xf]
        %v1014 = vld [vmem:[#allocation7 + $0xcc] sm:$0xf]
        %v1015 = vld [vmem:[#allocation7 + $0xd0] sm:$0xf]
        %v1016 = vld [vmem:[#allocation7 + $0xd4] sm:$0xf]
        %v1017 = vld [vmem:[#allocation7 + $0xd8] sm:$0xf]
        %v1018 = vld [vmem:[#allocation7 + $0xdc] sm:$0xf]
        %v1019 = vld [vmem:[#allocation7 + $0xe0] sm:$0xf]
        %v1020 = vld [vmem:[#allocation7 + $0xe4] sm:$0xf]
        %v1021 = vld [vmem:[#allocation7 + $0xe8] sm:$0xf]
        %v1022 = vld [vmem:[#allocation7 + $0xec] sm:$0xf]
        %v1023 = vld [vmem:[#allocation7 + $0xf0] sm:$0xf]
        %v1024 = vld [vmem:[#allocation7 + $0xf4] sm:$0xf]
        %v1025 = vld [vmem:[#allocation7 + $0xf8] sm:$0xf]
        %v1026 = vld [vmem:[#allocation7 + $0xfc] sm:$0xf]
        %v1027 = vld [vmem:[#allocation7 + $0x100] sm:$0xf]
        %v1028 = vld [vmem:[#allocation7 + $0x104] sm:$0xf]
        %v1029 = vld [vmem:[#allocation7 + $0x108] sm:$0xf]
        %v1030 = vld [vmem:[#allocation7 + $0x10c] sm:$0xf]
        %v1031 = vld [vmem:[#allocation7 + $0x110] sm:$0xf]
        %v1032 = vld [vmem:[#allocation7 + $0x114] sm:$0xf]
        %v1033 = vld [vmem:[#allocation7 + $0x118] sm:$0xf]
        %v1034 = vld [vmem:[#allocation7 + $0x11c] sm:$0xf]
        %v1035 = vld [vmem:[#allocation7 + $0x120] sm:$0xf]
        %v1036 = vld [vmem:[#allocation7 + $0x124] sm:$0xf]
        %v1037 = vld [vmem:[#allocation7 + $0x128] sm:$0xf]
        %v1038 = vld [vmem:[#allocation7 + $0x12c] sm:$0xf]
        %v1039 = vld [vmem:[#allocation7 + $0x130] sm:$0xf]
        %v1040 = vld [vmem:[#allocation7 + $0x134] sm:$0xf]
        %v1041 = vld [vmem:[#allocation7 + $0x138] sm:$0xf]
        %v1042 = vld [vmem:[#allocation7 + $0x13c] sm:$0xf]
        %v1123 = vunpack.c.l.b16 %v963
        %v1124 = vunpack.c.l.b16 %v964
        %v1125 = vunpack.c.l.b16 %v965
        %v1126 = vunpack.c.l.b16 %v966
        %v1127 = vunpack.c.l.b16 %v967
        %v1128 = vunpack.c.l.b16 %v968
        %v1129 = vunpack.c.l.b16 %v969
        %v1130 = vunpack.c.l.b16 %v970
        %v1131 = vunpack.c.l.b16 %v971
        %v1132 = vunpack.c.l.b16 %v972
        %v1133 = vunpack.c.l.b16 %v973
        %v1134 = vunpack.c.l.b16 %v974
        %v1135 = vunpack.c.l.b16 %v975
        %v1136 = vunpack.c.l.b16 %v976
        %v1137 = vunpack.c.l.b16 %v977
        %v1138 = vunpack.c.l.b16 %v978
        %v1139 = vunpack.c.l.b16 %v979
        %v1140 = vunpack.c.l.b16 %v980
        %v1141 = vunpack.c.l.b16 %v981
        %v1142 = vunpack.c.l.b16 %v982
        %v1143 = vunpack.c.l.b16 %v983
        %v1144 = vunpack.c.l.b16 %v984
        %v1145 = vunpack.c.l.b16 %v985
        %v1146 = vunpack.c.l.b16 %v986
        %v1147 = vunpack.c.l.b16 %v987
        %v1148 = vunpack.c.l.b16 %v988
        %v1149 = vunpack.c.l.b16 %v989
        %v1150 = vunpack.c.l.b16 %v990
        %v1151 = vunpack.c.l.b16 %v991
        %v1152 = vunpack.c.l.b16 %v992
        %v1153 = vunpack.c.l.b16 %v993
        %v1154 = vunpack.c.l.b16 %v994
        %v1155 = vunpack.c.l.b16 %v995
        %v1156 = vunpack.c.l.b16 %v996
        %v1157 = vunpack.c.l.b16 %v997
        %v1158 = vunpack.c.l.b16 %v998
        %v1159 = vunpack.c.l.b16 %v999
        %v1160 = vunpack.c.l.b16 %v1000
        %v1161 = vunpack.c.l.b16 %v1001
        %v1162 = vunpack.c.l.b16 %v1002
        %v1163 = vunpack.c.l.b16 %v1003
        %v1164 = vunpack.c.l.b16 %v1004
        %v1165 = vunpack.c.l.b16 %v1005
        %v1166 = vunpack.c.l.b16 %v1006
        %v1167 = vunpack.c.l.b16 %v1007
        %v1168 = vunpack.c.l.b16 %v1008
        %v1169 = vunpack.c.l.b16 %v1009
        %v1170 = vunpack.c.l.b16 %v1010
        %v1171 = vunpack.c.l.b16 %v1011
        %v1172 = vunpack.c.l.b16 %v1012
        %v1173 = vunpack.c.l.b16 %v1013
        %v1174 = vunpack.c.l.b16 %v1014
        %v1175 = vunpack.c.l.b16 %v1015
        %v1176 = vunpack.c.l.b16 %v1016
        %v1177 = vunpack.c.l.b16 %v1017
        %v1178 = vunpack.c.l.b16 %v1018
        %v1179 = vunpack.c.l.b16 %v1019
        %v1180 = vunpack.c.l.b16 %v1020
        %v1181 = vunpack.c.l.b16 %v1021
        %v1182 = vunpack.c.l.b16 %v1022
        %v1183 = vunpack.c.l.b16 %v1023
        %v1184 = vunpack.c.l.b16 %v1024
        %v1185 = vunpack.c.l.b16 %v1025
        %v1186 = vunpack.c.l.b16 %v1026
        %v1187 = vunpack.c.l.b16 %v1027
        %v1188 = vunpack.c.l.b16 %v1028
        %v1189 = vunpack.c.l.b16 %v1029
        %v1190 = vunpack.c.l.b16 %v1030
        %v1191 = vunpack.c.l.b16 %v1031
        %v1192 = vunpack.c.l.b16 %v1032
        %v1193 = vunpack.c.l.b16 %v1033
        %v1194 = vunpack.c.l.b16 %v1034
        %v1195 = vunpack.c.l.b16 %v1035
        %v1196 = vunpack.c.l.b16 %v1036
        %v1197 = vunpack.c.l.b16 %v1037
        %v1198 = vunpack.c.l.b16 %v1038
        %v1199 = vunpack.c.l.b16 %v1039
        %v1200 = vunpack.c.l.b16 %v1040
        %v1201 = vunpack.c.l.b16 %v1041
        %v1202 = vunpack.c.l.b16 %v1042
        %v1203 = vpack.c.b16 %v1124, %v1123
        %v1204 = vpack.c.b16 %v1126, %v1125
        %v1205 = vpack.c.b16 %v1128, %v1127
        %v1206 = vpack.c.b16 %v1130, %v1129
        %v1207 = vpack.c.b16 %v1132, %v1131
        %v1208 = vpack.c.b16 %v1134, %v1133
        %v1209 = vpack.c.b16 %v1136, %v1135
        %v1210 = vpack.c.b16 %v1138, %v1137
        %v1211 = vpack.c.b16 %v1140, %v1139
        %v1212 = vpack.c.b16 %v1142, %v1141
        %v1213 = vpack.c.b16 %v1144, %v1143
        %v1214 = vpack.c.b16 %v1146, %v1145
        %v1215 = vpack.c.b16 %v1148, %v1147
        %v1216 = vpack.c.b16 %v1150, %v1149
        %v1217 = vpack.c.b16 %v1152, %v1151
        %v1218 = vpack.c.b16 %v1154, %v1153
        %v1219 = vpack.c.b16 %v1156, %v1155
        %v1220 = vpack.c.b16 %v1158, %v1157
        %v1221 = vpack.c.b16 %v1160, %v1159
        %v1222 = vpack.c.b16 %v1162, %v1161
        %v1223 = vpack.c.b16 %v1164, %v1163
        %v1224 = vpack.c.b16 %v1166, %v1165
        %v1225 = vpack.c.b16 %v1168, %v1167
        %v1226 = vpack.c.b16 %v1170, %v1169
        %v1227 = vpack.c.b16 %v1172, %v1171
        %v1228 = vpack.c.b16 %v1174, %v1173
        %v1229 = vpack.c.b16 %v1176, %v1175
        %v1230 = vpack.c.b16 %v1178, %v1177
        %v1231 = vpack.c.b16 %v1180, %v1179
        %v1232 = vpack.c.b16 %v1182, %v1181
        %v1233 = vpack.c.b16 %v1184, %v1183
        %v1234 = vpack.c.b16 %v1186, %v1185
        %v1235 = vpack.c.b16 %v1188, %v1187
        %v1236 = vpack.c.b16 %v1190, %v1189
        %v1237 = vpack.c.b16 %v1192, %v1191
        %v1238 = vpack.c.b16 %v1194, %v1193
        %v1239 = vpack.c.b16 %v1196, %v1195
        %v1240 = vpack.c.b16 %v1198, %v1197
        %v1241 = vpack.c.b16 %v1200, %v1199
        %v1242 = vpack.c.b16 %v1202, %v1201
        %1283 = vmatpush.bf16.msra.mxu0 %v1210
        %1284 = vmatpush.bf16.msra.mxu0 %v1209
        %1285 = vmatpush.bf16.msra.mxu0 %v1208
        %1286 = vmatpush.bf16.msra.mxu0 %v1207
        %1287 = vmatpush.bf16.msra.mxu0 %v1206
        %1288 = vmatpush.bf16.msra.mxu0 %v1205
        %1289 = vmatpush.bf16.msra.mxu0 %v1204
        %1290 = vmatpush.bf16.msra.mxu0 %v1203
        %1291 = vmatmul.bf16.gmra.mxu0 %v382
        %v1292 = vpop.f32.mrf.mxu0
        %v1293 = vadd.f32 0.0, %v1292
        %v1294 = vpop.f32.mrf.mxu0
        %1295 = vdwg.mxu0
        %1296 = vmatpush.bf16.msra.mxu0 %v1218
        %1297 = vmatpush.bf16.msra.mxu0 %v1217
        %1298 = vmatpush.bf16.msra.mxu0 %v1216
        %1299 = vmatpush.bf16.msra.mxu0 %v1215
        %1300 = vmatpush.bf16.msra.mxu0 %v1214
        %1301 = vmatpush.bf16.msra.mxu0 %v1213
        %1302 = vmatpush.bf16.msra.mxu0 %v1212
        %1303 = vmatpush.bf16.msra.mxu0 %v1211
        %1304 = vmatmul.bf16.gmra.mxu0 %v392
        %v1305 = vpop.f32.mrf.mxu0
        %v1306 = vadd.f32 %v1293, %v1305
        %v1307 = vpop.f32.mrf.mxu0
        %1308 = vdwg.mxu0
        %1309 = vmatpush.bf16.msra.mxu0 %v1226
        %1310 = vmatpush.bf16.msra.mxu0 %v1225
        %1311 = vmatpush.bf16.msra.mxu0 %v1224
        %1312 = vmatpush.bf16.msra.mxu0 %v1223
        %1313 = vmatpush.bf16.msra.mxu0 %v1222
        %1314 = vmatpush.bf16.msra.mxu0 %v1221
        %1315 = vmatpush.bf16.msra.mxu0 %v1220
        %1316 = vmatpush.bf16.msra.mxu0 %v1219
        %1317 = vmatmul.bf16.gmra.mxu0 %v394
        %v1318 = vpop.f32.mrf.mxu0
        %v1319 = vadd.f32 %v1306, %v1318
        %v1320 = vpop.f32.mrf.mxu0
        %1321 = vdwg.mxu0
        %1322 = vmatpush.bf16.msra.mxu0 %v1234
        %1323 = vmatpush.bf16.msra.mxu0 %v1233
        %1324 = vmatpush.bf16.msra.mxu0 %v1232
        %1325 = vmatpush.bf16.msra.mxu0 %v1231
        %1326 = vmatpush.bf16.msra.mxu0 %v1230
        %1327 = vmatpush.bf16.msra.mxu0 %v1229
        %1328 = vmatpush.bf16.msra.mxu0 %v1228
        %1329 = vmatpush.bf16.msra.mxu0 %v1227
        %1330 = vmatmul.bf16.gmra.mxu0 %v640
        %v1331 = vpop.f32.mrf.mxu0
        %v1332 = vadd.f32 %v1319, %v1331
        %v1333 = vpop.f32.mrf.mxu0
        %1334 = vdwg.mxu0
        %1335 = vmatpush.bf16.msra.mxu0 %v1242
        %1336 = vmatpush.bf16.msra.mxu0 %v1241
        %1337 = vmatpush.bf16.msra.mxu0 %v1240
        %1338 = vmatpush.bf16.msra.mxu0 %v1239
        %1339 = vmatpush.bf16.msra.mxu0 %v1238
        %1340 = vmatpush.bf16.msra.mxu0 %v1237
        %1341 = vmatpush.bf16.msra.mxu0 %v1236
        %1342 = vmatpush.bf16.msra.mxu0 %v1235
        %1343 = vmatmul.bf16.gmra.mxu0 %v961
        %v1344 = vpop.f32.mrf.mxu0
        %v1345 = vadd.f32 %v1332, %v1344
        %v1346 = vpop.f32.mrf.mxu0
        %1347 = vdwg.mxu0
        %vm1348 = vcmask 1043456
        %v1349 = vsel %vm1348, %v1345, -inf
        %v1350 = vrot.slane %v1349, 4
        %v1351 = vmax.f32 %v1349, %v1350
        %v1352 = vrot.slane %v1351, 2
        %v1353 = vmax.f32 %v1351, %v1352
        %v1354 = vrot.slane %v1353, 1
        %v1355 = vmax.f32 %v1353, %v1354
        %v1356 = vld [vmem:[%s6] sm:$0x1]
        %v1357 = vadd.f32 %v1355, %v1356
        %v1358 = vmax.f32 %v1357, 0.0
        %v1359 = vpack.c.bf16 %v637, %v637
        %v1360 = vpack.c.bf16 %v960, %v960
        %v1361 = vpack.c.bf16 %v1358, %v1358
        %v1362 = vld [vmem:[%s7] sm:$0xf]
        %v1363 = vld [vmem:[%s7 + $0x4] sm:$0xf]
        %v1364 = vld [vmem:[%s7 + $0x8] sm:$0xf]
        %v1365 = vld [vmem:[%s7 + $0xc] sm:$0xf]
        %v1366 = vld [vmem:[%s7 + $0x10] sm:$0xf]
        %v1367 = vld [vmem:[%s7 + $0x14] sm:$0xf]
        %v1368 = vld [vmem:[%s7 + $0x18] sm:$0xf]
        %v1369 = vld [vmem:[%s7 + $0x1c] sm:$0xf]
        %v1370 = vld [vmem:[%s7 + $0x20] sm:$0xf]
        %v1371 = vld [vmem:[%s7 + $0x24] sm:$0xf]
        %v1372 = vld [vmem:[%s7 + $0x28] sm:$0xf]
        %v1373 = vld [vmem:[%s7 + $0x2c] sm:$0xf]
        %v1374 = vld [vmem:[%s7 + $0x30] sm:$0xf]
        %v1375 = vld [vmem:[%s7 + $0x34] sm:$0xf]
        %v1376 = vld [vmem:[%s7 + $0x38] sm:$0xf]
        %v1377 = vld [vmem:[%s7 + $0x3c] sm:$0xf]
        %v1378 = vld [vmem:[%s7 + $0x40] sm:$0xf]
        %v1379 = vld [vmem:[%s7 + $0x44] sm:$0xf]
        %v1380 = vld [vmem:[%s7 + $0x48] sm:$0xf]
        %v1381 = vld [vmem:[%s7 + $0x4c] sm:$0xf]
        %v1382 = vld [vmem:[%s7 + $0x50] sm:$0xf]
        %v1383 = vld [vmem:[%s7 + $0x54] sm:$0xf]
        %v1384 = vld [vmem:[%s7 + $0x58] sm:$0xf]
        %v1385 = vld [vmem:[%s7 + $0x5c] sm:$0xf]
        %v1386 = vld [vmem:[%s7 + $0x60] sm:$0xf]
        %v1387 = vld [vmem:[%s7 + $0x64] sm:$0xf]
        %v1388 = vld [vmem:[%s7 + $0x68] sm:$0xf]
        %v1389 = vld [vmem:[%s7 + $0x6c] sm:$0xf]
        %v1390 = vld [vmem:[%s7 + $0x70] sm:$0xf]
        %v1391 = vld [vmem:[%s7 + $0x74] sm:$0xf]
        %v1392 = vld [vmem:[%s7 + $0x78] sm:$0xf]
        %v1393 = vld [vmem:[%s7 + $0x7c] sm:$0xf]
        %v1394 = vld [vmem:[%s7 + $0x80] sm:$0xf]
        %v1395 = vld [vmem:[%s7 + $0x84] sm:$0xf]
        %v1396 = vld [vmem:[%s7 + $0x88] sm:$0xf]
        %v1397 = vld [vmem:[%s7 + $0x8c] sm:$0xf]
        %v1398 = vld [vmem:[%s7 + $0x90] sm:$0xf]
        %v1399 = vld [vmem:[%s7 + $0x94] sm:$0xf]
        %v1400 = vld [vmem:[%s7 + $0x98] sm:$0xf]
        %v1401 = vld [vmem:[%s7 + $0x9c] sm:$0xf]
        %v1402 = vld [vmem:[%s7 + $0xa0] sm:$0xf]
        %v1403 = vld [vmem:[%s7 + $0xa4] sm:$0xf]
        %v1404 = vld [vmem:[%s7 + $0xa8] sm:$0xf]
        %v1405 = vld [vmem:[%s7 + $0xac] sm:$0xf]
        %v1406 = vld [vmem:[%s7 + $0xb0] sm:$0xf]
        %v1407 = vld [vmem:[%s7 + $0xb4] sm:$0xf]
        %v1408 = vld [vmem:[%s7 + $0xb8] sm:$0xf]
        %v1409 = vld [vmem:[%s7 + $0xbc] sm:$0xf]
        %v1410 = vld [vmem:[%s8] sm:$0x1]
        %v1459 = vunpack.c.l.b16 %v1362
        %v1460 = vunpack.c.l.b16 %v1363
        %v1461 = vunpack.c.l.b16 %v1364
        %v1462 = vunpack.c.l.b16 %v1365
        %v1463 = vunpack.c.l.b16 %v1366
        %v1464 = vunpack.c.l.b16 %v1367
        %v1465 = vunpack.c.l.b16 %v1368
        %v1466 = vunpack.c.l.b16 %v1369
        %v1467 = vunpack.c.l.b16 %v1370
        %v1468 = vunpack.c.l.b16 %v1371
        %v1469 = vunpack.c.l.b16 %v1372
        %v1470 = vunpack.c.l.b16 %v1373
        %v1471 = vunpack.c.l.b16 %v1374
        %v1472 = vunpack.c.l.b16 %v1375
        %v1473 = vunpack.c.l.b16 %v1376
        %v1474 = vunpack.c.l.b16 %v1377
        %v1475 = vunpack.c.l.b16 %v1378
        %v1476 = vunpack.c.l.b16 %v1379
        %v1477 = vunpack.c.l.b16 %v1380
        %v1478 = vunpack.c.l.b16 %v1381
        %v1479 = vunpack.c.l.b16 %v1382
        %v1480 = vunpack.c.l.b16 %v1383
        %v1481 = vunpack.c.l.b16 %v1384
        %v1482 = vunpack.c.l.b16 %v1385
        %v1483 = vunpack.c.l.b16 %v1386
        %v1484 = vunpack.c.l.b16 %v1387
        %v1485 = vunpack.c.l.b16 %v1388
        %v1486 = vunpack.c.l.b16 %v1389
        %v1487 = vunpack.c.l.b16 %v1390
        %v1488 = vunpack.c.l.b16 %v1391
        %v1489 = vunpack.c.l.b16 %v1392
        %v1490 = vunpack.c.l.b16 %v1393
        %v1491 = vunpack.c.l.b16 %v1394
        %v1492 = vunpack.c.l.b16 %v1395
        %v1493 = vunpack.c.l.b16 %v1396
        %v1494 = vunpack.c.l.b16 %v1397
        %v1495 = vunpack.c.l.b16 %v1398
        %v1496 = vunpack.c.l.b16 %v1399
        %v1497 = vunpack.c.l.b16 %v1400
        %v1498 = vunpack.c.l.b16 %v1401
        %v1499 = vunpack.c.l.b16 %v1402
        %v1500 = vunpack.c.l.b16 %v1403
        %v1501 = vunpack.c.l.b16 %v1404
        %v1502 = vunpack.c.l.b16 %v1405
        %v1503 = vunpack.c.l.b16 %v1406
        %v1504 = vunpack.c.l.b16 %v1407
        %v1505 = vunpack.c.l.b16 %v1408
        %v1506 = vunpack.c.l.b16 %v1409
        %v1507 = vpack.c.b16 %v1460, %v1459
        %v1508 = vpack.c.b16 %v1462, %v1461
        %v1509 = vpack.c.b16 %v1464, %v1463
        %v1510 = vpack.c.b16 %v1466, %v1465
        %v1511 = vpack.c.b16 %v1468, %v1467
        %v1512 = vpack.c.b16 %v1470, %v1469
        %v1513 = vpack.c.b16 %v1472, %v1471
        %v1514 = vpack.c.b16 %v1474, %v1473
        %v1515 = vpack.c.b16 %v1476, %v1475
        %v1516 = vpack.c.b16 %v1478, %v1477
        %v1517 = vpack.c.b16 %v1480, %v1479
        %v1518 = vpack.c.b16 %v1482, %v1481
        %v1519 = vpack.c.b16 %v1484, %v1483
        %v1520 = vpack.c.b16 %v1486, %v1485
        %v1521 = vpack.c.b16 %v1488, %v1487
        %v1522 = vpack.c.b16 %v1490, %v1489
        %v1523 = vpack.c.b16 %v1492, %v1491
        %v1524 = vpack.c.b16 %v1494, %v1493
        %v1525 = vpack.c.b16 %v1496, %v1495
        %v1526 = vpack.c.b16 %v1498, %v1497
        %v1527 = vpack.c.b16 %v1500, %v1499
        %v1528 = vpack.c.b16 %v1502, %v1501
        %v1529 = vpack.c.b16 %v1504, %v1503
        %v1530 = vpack.c.b16 %v1506, %v1505
        %1555 = vmatpush.bf16.msra.mxu0 %v1514
        %1556 = vmatpush.bf16.msra.mxu0 %v1513
        %1557 = vmatpush.bf16.msra.mxu0 %v1512
        %1558 = vmatpush.bf16.msra.mxu0 %v1511
        %1559 = vmatpush.bf16.msra.mxu0 %v1510
        %1560 = vmatpush.bf16.msra.mxu0 %v1509
        %1561 = vmatpush.bf16.msra.mxu0 %v1508
        %1562 = vmatpush.bf16.msra.mxu0 %v1507
        %1563 = vmatmul.bf16.gmra.mxu0 %v1359
        %v1564 = vpop.f32.mrf.mxu0
        %v1565 = vadd.f32 %v1410, %v1564
        %v1566 = vpop.f32.mrf.mxu0
        %1567 = vdwg.mxu0
        %1568 = vmatpush.bf16.msra.mxu0 %v1522
        %1569 = vmatpush.bf16.msra.mxu0 %v1521
        %1570 = vmatpush.bf16.msra.mxu0 %v1520
        %1571 = vmatpush.bf16.msra.mxu0 %v1519
        %1572 = vmatpush.bf16.msra.mxu0 %v1518
        %1573 = vmatpush.bf16.msra.mxu0 %v1517
        %1574 = vmatpush.bf16.msra.mxu0 %v1516
        %1575 = vmatpush.bf16.msra.mxu0 %v1515
        %1576 = vmatmul.bf16.gmra.mxu0 %v1360
        %v1577 = vpop.f32.mrf.mxu0
        %v1578 = vadd.f32 %v1565, %v1577
        %v1579 = vpop.f32.mrf.mxu0
        %1580 = vdwg.mxu0
        %1581 = vmatpush.bf16.msra.mxu0 %v1530
        %1582 = vmatpush.bf16.msra.mxu0 %v1529
        %1583 = vmatpush.bf16.msra.mxu0 %v1528
        %1584 = vmatpush.bf16.msra.mxu0 %v1527
        %1585 = vmatpush.bf16.msra.mxu0 %v1526
        %1586 = vmatpush.bf16.msra.mxu0 %v1525
        %1587 = vmatpush.bf16.msra.mxu0 %v1524
        %1588 = vmatpush.bf16.msra.mxu0 %v1523
        %1589 = vmatmul.bf16.gmra.mxu0 %v1361
        %v1590 = vpop.f32.mrf.mxu0
        %v1591 = vadd.f32 %v1578, %v1590
        %v1592 = vpop.f32.mrf.mxu0
        %1593 = vdwg.mxu0
        %vm1594 = vcmask 8192
        %1595 = vst.msk [vmem:[%s381] sm:$0x1] %vm1594, %v1591
        %s1596 = sand.u32 %s229, 1
        %s1597 = scalar_lea.sflag [#allocation4], %s1596
        %s1598 = sand.u32 %s229, 1
        %s1599 = scalar_lea.vmem [#allocation8], %s1598
        // Predicated region
        $region69: #{tpu_custom_call.1} parent=55 // pred_check
          %p1600 = pneg %p239
        $region70: #{tpu_custom_call.1} parent=55 // pred_check_branch
          %1602 = sbr.rel (%p1600) target = $region72
        $region71: #{tpu_custom_call.1} parent=55 // pred_region
          %1604 = vsyncadd %s1597, 0
          %s1605 = scalar_lea.hbm %s9, %s27
          %s1607 = sshll.u32 %s1599, 4
          %s1608 = int_to_ptr.vmem [resolvable:$true] %s1607
          %s1609 = sshll.u32 %s1605, 4
          %s1610 = int_to_ptr.hbm [resolvable:$true] %s1609
          %1612 = dma.vmem_to_hbm [thread:$0]  %s1608, 16, %s1610, %s1597
        $region72: #{tpu_custom_call.1} parent=55 // pred_fallthru
          _
      $region56: #{tpu_custom_call.1} parent=5 // pred_fallthru
        _
      %p1613 = scmp.le.s32.totalorder 2, %s22
      // Predicated region
      $region73: #{tpu_custom_call.1} parent=5 // pred_check
        %p1614 = pneg %p1613
      $region74: #{tpu_custom_call.1} parent=5 // pred_check_branch
        %1616 = sbr.rel (%p1614) target = $region76
      $region75: #{tpu_custom_call.1} parent=5 // pred_region
        %s1617 = ssub.s32 %s22, 2
        // Predicated region
        $region77: #{tpu_custom_call.1} parent=75 // pred_check
          %p1618 = pneg %p245
        $region78: #{tpu_custom_call.1} parent=75 // pred_check_branch
          %1620 = sbr.rel (%p1618) target = $region80
        $region79: #{tpu_custom_call.1} parent=75 // pred_region
          %s1621 = sand.u32 %s230, 1
          %s1622 = scalar_lea.sflag [#allocation4], %s1621
          %s1623 = sand.u32 %s230, 1
          %s1624 = scalar_lea.vmem [#allocation8], %s1623
          %1626 = dma.done %s1622, 16
        $region80: #{tpu_custom_call.1} parent=75 // pred_fallthru
          _
      $region76: #{tpu_custom_call.1} parent=5 // pred_fallthru
        _
    $region6: #{tpu_custom_call.1} parent=1 // loop_footer
      %s26 = sadd.s32 1, %s22
    $region7: #{tpu_custom_call.1} parent=1 // loop_footer_branch
      %21 = sbr.rel target = $region3
    $region8: #{tpu_custom_call.1} parent=1 // loop_exit
      _
    %1627 = vsyncpa [#allocation3], 1
    %s1628 = scalar_lea.sflag [#allocation3], 1
    %1629 = vsyncpa %s1628, 1
    %1630 = vsyncpa [#allocation6], 1
    %1631 = vsyncpa [#allocation4], 1
    %s1632 = scalar_lea.sflag [#allocation4], 1
    %1633 = vsyncpa %s1632, 1

</llo_original>
